<compile_context>
chip_gen: v7x
topology: tpu7x:2x2x1
jax: 0.10.0
libtpu: 0.0.40
codegen_flags: <defaults>
</compile_context>

<pallas_src>
import functools

import jax
import jax.numpy as jnp
from jax import lax
from jax.experimental import pallas as pl
from jax.experimental.pallas import tpu as pltpu


def _round_up(x, m):
    return ((x + m - 1) // m) * m


def _graph_learner_kernel(e_ref, out_ref, *, num_nodes, top_k):
    """One grid step: top-k over a tm-row slab of sim = relu(E @ E.T).

    e_ref:   (n_pad, n_pad) resident embedding (f32 or bf16), constant across
             grid steps (single-buffered).
    out_ref: (tm, out_lanes) f32 packed output block:
             lanes [0, k)   -> top-k values (f32)
             lanes [k, 2k)  -> top-k column indices (int32 bit pattern)
             rest           -> zero padding (keeps the store lane-dense).
    """
    tm, out_lanes = out_ref.shape
    n_pad = e_ref.shape[0]

    i = pl.program_id(0)
    row_start = pl.multiple_of(i * tm, tm)

    # Query rows sliced out of the resident E: no second HBM stream of E and
    # no extra VMEM copy. Slice start is tile-aligned (tm % 8 == 0).
    e_rows = e_ref[pl.ds(row_start, tm), :]
    e_full = e_ref[...]

    # sim = relu(E_rows @ E.T): contract the LAST dim of BOTH operands so the
    # MXU consumes E directly (no materialized transpose).
    sim = lax.dot_general(
        e_rows, e_full,
        dimension_numbers=(((1,), (1,)), ((), ())),
        preferred_element_type=jnp.float32,
    )
    sim = jnp.maximum(sim, 0.0)

    neg_inf = jnp.float32(-jnp.inf)
    row_iota = lax.broadcasted_iota(jnp.int32, sim.shape, 0)
    col_iota = lax.broadcasted_iota(jnp.int32, sim.shape, 1)

    # fill_diagonal_(-inf) restricted to this row slab, plus padded columns.
    kill = ((row_iota + i * tm) == col_iota) | (col_iota >= num_nodes)
    sim = jnp.where(kill, neg_inf, sim)

    # Iterative top-k along lanes; k is small & static so this unrolls at trace
    # time. Result columns accumulate in registers; ONE lane-dense store below.
    # TODO(synk): for very large N (resident E no longer fits VMEM, v7x first)
    # restructure to a 2-D grid that streams sim's column dim with a running
    # top-k candidate buffer in VMEM scratch (second axis "arbitrary").
    vals_cols = []
    idx_cols = []
    for _ in range(top_k):
        m = jnp.max(sim, axis=-1, keepdims=True)                      # (tm, 1)
        # first-occurrence argmax: lowest column index wins (torch/jax ties)
        idx = jnp.min(jnp.where(sim == m, col_iota, n_pad),
                      axis=-1, keepdims=True)                         # (tm, 1)
        vals_cols.append(m)
        idx_cols.append(idx)
        sim = jnp.where(col_iota == idx, neg_inf, sim)                # knock out

    vals_block = jnp.concatenate(vals_cols, axis=1)                   # (tm,k) f32
    idx_block = jnp.concatenate(idx_cols, axis=1)                     # (tm,k) i32

    parts = [vals_block, pltpu.bitcast(idx_block, jnp.float32)]
    pad_lanes = out_lanes - 2 * top_k
    if pad_lanes > 0:
        parts.append(jnp.zeros((tm, pad_lanes), jnp.float32))
    out_ref[...] = jnp.concatenate(parts, axis=1)                     # one store


def graph_learner_forward(embedding, top_k, *, block_rows=None,
                          use_bf16_matmul=None):
    """Returns (edge_index (2, N*k) int32, edge_weight (N*k,) f32)."""
    num_nodes = embedding.shape[0]
    if top_k >= num_nodes:
        raise ValueError(
            "top_k must be < num_nodes: the diagonal is masked to -inf, so only "
            f"{num_nodes - 1} valid neighbours exist per node."
        )

    # bf16 MXU operands (f32 accumulation) by default once the matmul is the
    # binding unit. NOTE: bf16 is not bit-identical to the f32 reference and
    # can flip near-ties in the top-k ranking; keep f32 for small N / exactness.
    if use_bf16_matmul is None:
        use_bf16_matmul = num_nodes >= 1024
    e_dtype = jnp.bfloat16 if use_bf16_matmul else jnp.float32

    # Pad N to a lane-aligned size; padded columns are masked to -inf in the
    # kernel, padded rows are sliced away below -> semantics unchanged, and no
    # silent row-dropping for N not divisible by the tile.
    n_pad = _round_up(num_nodes, 128)
    if block_rows is None:
        # Prefer tm=256: full 256-wide MXU on v6e/v7x, smaller live sim slab.
        tm = n_pad if n_pad <= 256 else (256 if n_pad % 256 == 0 else 128)
    else:
        tm = int(block_rows)
        if tm % 8 != 0 or n_pad % tm != 0:
            raise ValueError(
                f"block_rows must be a multiple of 8 that divides the padded "
                f"node count {n_pad}; got {block_rows}."
            )
    grid = (n_pad // tm,)

    # Cast + pad ONCE in the wrapper (not per grid step inside the kernel).
    e = embedding.astype(e_dtype)
    if n_pad != num_nodes:
        e = jnp.pad(e, ((0, n_pad - num_nodes), (0, n_pad - num_nodes)))

    # Lane-dense packed output: 2k useful lanes rounded up to a 128 multiple.
    out_lanes = _round_up(2 * top_k, 128)

    # Generation-aware VMEM budget: ~85% of physical per-core capacity
    # (~109 MiB on v5e/v6e, ~54 MiB on v7x) leaves headroom for Mosaic scratch.
    try:
        vmem_cap = pltpu.get_tpu_info().vmem_capacity_bytes
    except Exception:  # pragma: no cover - fallback for interpret/odd backends
        vmem_cap = 64 * 2**20
    vmem_limit = int(0.85 * vmem_cap)

    kernel = functools.partial(_graph_learner_kernel,
                               num_nodes=num_nodes, top_k=top_k)

    packed = pl.pallas_call(
        kernel,
        grid=grid,
        in_specs=[
            # Full E, constant block index -> VMEM-resident across grid steps.
            # Buffered(1): the block never changes, a double buffer is waste.
            pl.BlockSpec((n_pad, n_pad), lambda i: (0, 0),
                         pipeline_mode=pl.Buffered(1)),
        ],
        out_specs=pl.BlockSpec((tm, out_lanes), lambda i: (i, 0)),
        out_shape=jax.ShapeDtypeStruct((n_pad, out_lanes), jnp.float32),
        compiler_params=pltpu.CompilerParams(
            dimension_semantics=("parallel",),
            vmem_limit_bytes=vmem_limit,
        ),
    )(e)

    # Unpack the lane-dense block and drop padded rows.
    topk_vals = packed[:num_nodes, :top_k]
    topk_idx = lax.bitcast_convert_type(
        packed[:num_nodes, top_k:2 * top_k], jnp.int32)

    # Glue: assemble edge_index / edge_weight exactly like the torch code.
    node_indices = jnp.broadcast_to(
        jnp.arange(num_nodes, dtype=jnp.int32)[:, None], (num_nodes, top_k)
    )
    edge_index = jnp.stack(
        [node_indices.reshape(-1), topk_idx.reshape(-1)], axis=0
    )
    edge_weight = topk_vals.reshape(-1)
    return edge_index, edge_weight


if __name__ == "__main__":
    num_nodes = 16
    top_k = 4

    # Deterministic parameter init (nn.Parameter(torch.randn(N, N)) analogue).
    key = jax.random.PRNGKey(0)
    embedding = jax.random.normal(key, (num_nodes, num_nodes), dtype=jnp.float32)

    # NOTE: at N=16 the kernel is pure launch overhead; kept tiny to match the
    # module's toy configuration. bf16 auto-enables only for N >= 1024.
    edge_index, edge_weight = graph_learner_forward(embedding, top_k)
    jax.block_until_ready((edge_index, edge_weight))

    # Sanity checks against a pure-JAX reference (f32 path -> exact ranking).
    sim_ref = jnp.maximum(embedding @ embedding.T, 0.0)
    sim_ref = jnp.where(jnp.eye(num_nodes, dtype=bool), -jnp.inf, sim_ref)
    ref_vals, ref_idx = jax.lax.top_k(sim_ref, top_k)
    assert edge_index.shape == (2, num_nodes * top_k)
    assert edge_weight.shape == (num_nodes * top_k,)
    assert jnp.allclose(edge_weight, ref_vals.reshape(-1), atol=1e-5)
    assert jnp.array_equal(edge_index[1], ref_idx.reshape(-1).astype(jnp.int32))

    print("KERNEL_OK")
</pallas_src>

<mosaic_0001>
module attributes {stable_mosaic.version = 11 : i64} {
  func.func @_graph_learner_kernel(%arg0: i32, %arg1: memref<128x128xf32, #tpu.memory_space<vmem>>, %arg2: memref<128x128xf32, #tpu.memory_space<vmem>>) attributes {dimension_semantics = [#tpu.dimension_semantics<parallel>], iteration_bounds = array<i64: 1>, scalar_prefetch = 0 : i64, scratch_operands = 0 : i64, tpu.core_type = #tpu.core_type<tc>, window_params = [{pipeline_mode = #tpu.pipeline_mode<synchronous>, transform_indices = @transform_0, window_bounds = array<i64: 128, 128>}, {transform_indices = @transform_1, window_bounds = array<i64: 128, 128>}]} {
    %c128_i32 = arith.constant 128 : i32
    %0 = arith.muli %arg0, %c128_i32 : i32
    %1 = tpu.assume_multiple %0, 128 : i32
    %2 = arith.index_cast %1 : i32 to index
    %c0 = arith.constant 0 : index
    %3 = vector.load %arg1[%2, %c0] : memref<128x128xf32, #tpu.memory_space<vmem>>, vector<128x128xf32>
    %c0_0 = arith.constant 0 : index
    %c0_1 = arith.constant 0 : index
    %4 = vector.load %arg1[%c0_0, %c0_1] : memref<128x128xf32, #tpu.memory_space<vmem>>, vector<128x128xf32>
    %cst = arith.constant dense<0.000000e+00> : vector<128x128xf32>
    %5 = tpu.matmul %3, %4, %cst {dimension_numbers = #tpu.dot_dimension_numbers<[1], [1], [0], [0], [0, 0, 1, 0], [], []>} : vector<128x128xf32>, vector<128x128xf32>, vector<128x128xf32> -> vector<128x128xf32>
    %cst_2 = arith.constant 0.000000e+00 : f32
    %6 = vector.broadcast %cst_2 : f32 to vector<128x128xf32>
    %7 = arith.maximumf %5, %6 : vector<128x128xf32>
    %8 = tpu.iota {dimensions = array<i32: 0>} : vector<128x128xi32>
    %9 = tpu.iota {dimensions = array<i32: 1>} : vector<128x128xi32>
    %c128_i32_3 = arith.constant 128 : i32
    %10 = arith.muli %arg0, %c128_i32_3 : i32
    %11 = vector.broadcast %10 : i32 to vector<128x128xi32>
    %12 = arith.addi %8, %11 : vector<128x128xi32>
    %13 = arith.cmpi eq, %12, %9 : vector<128x128xi32>
    %c16_i32 = arith.constant 16 : i32
    %14 = vector.broadcast %c16_i32 : i32 to vector<128x128xi32>
    %15 = arith.cmpi sge, %9, %14 : vector<128x128xi32>
    %16 = arith.ori %13, %15 : vector<128x128xi1>
    %cst_4 = arith.constant 0xFF800000 : f32
    %17 = vector.broadcast %cst_4 : f32 to vector<128x128xf32>
    %18 = arith.select %16, %17, %7 : vector<128x128xi1>, vector<128x128xf32>
    %cst_5 = arith.constant dense<0xFF800000> : vector<128xf32>
    %19 = vector.multi_reduction <maximumf>, %18, %cst_5 [1] : vector<128x128xf32> to vector<128xf32>
    %20 = vector.shape_cast %19 : vector<128xf32> to vector<128x1xf32>
    %21 = vector.broadcast %20 : vector<128x1xf32> to vector<128x128xf32>
    %22 = arith.cmpf oeq, %18, %21 : vector<128x128xf32>
    %c128_i32_6 = arith.constant 128 : i32
    %23 = vector.broadcast %c128_i32_6 : i32 to vector<128x128xi32>
    %24 = arith.select %22, %9, %23 : vector<128x128xi1>, vector<128x128xi32>
    %cst_7 = arith.constant dense<2147483647> : vector<128xi32>
    %25 = vector.multi_reduction <minsi>, %24, %cst_7 [1] : vector<128x128xi32> to vector<128xi32>
    %26 = vector.shape_cast %25 : vector<128xi32> to vector<128x1xi32>
    %27 = vector.broadcast %26 : vector<128x1xi32> to vector<128x128xi32>
    %28 = arith.cmpi eq, %9, %27 : vector<128x128xi32>
    %cst_8 = arith.constant 0xFF800000 : f32
    %29 = vector.broadcast %cst_8 : f32 to vector<128x128xf32>
    %30 = arith.select %28, %29, %18 : vector<128x128xi1>, vector<128x128xf32>
    %cst_9 = arith.constant dense<0xFF800000> : vector<128xf32>
    %31 = vector.multi_reduction <maximumf>, %30, %cst_9 [1] : vector<128x128xf32> to vector<128xf32>
    %32 = vector.shape_cast %31 : vector<128xf32> to vector<128x1xf32>
    %33 = vector.broadcast %32 : vector<128x1xf32> to vector<128x128xf32>
    %34 = arith.cmpf oeq, %30, %33 : vector<128x128xf32>
    %c128_i32_10 = arith.constant 128 : i32
    %35 = vector.broadcast %c128_i32_10 : i32 to vector<128x128xi32>
    %36 = arith.select %34, %9, %35 : vector<128x128xi1>, vector<128x128xi32>
    %cst_11 = arith.constant dense<2147483647> : vector<128xi32>
    %37 = vector.multi_reduction <minsi>, %36, %cst_11 [1] : vector<128x128xi32> to vector<128xi32>
    %38 = vector.shape_cast %37 : vector<128xi32> to vector<128x1xi32>
    %39 = vector.broadcast %38 : vector<128x1xi32> to vector<128x128xi32>
    %40 = arith.cmpi eq, %9, %39 : vector<128x128xi32>
    %cst_12 = arith.constant 0xFF800000 : f32
    %41 = vector.broadcast %cst_12 : f32 to vector<128x128xf32>
    %42 = arith.select %40, %41, %30 : vector<128x128xi1>, vector<128x128xf32>
    %cst_13 = arith.constant dense<0xFF800000> : vector<128xf32>
    %43 = vector.multi_reduction <maximumf>, %42, %cst_13 [1] : vector<128x128xf32> to vector<128xf32>
    %44 = vector.shape_cast %43 : vector<128xf32> to vector<128x1xf32>
    %45 = vector.broadcast %44 : vector<128x1xf32> to vector<128x128xf32>
    %46 = arith.cmpf oeq, %42, %45 : vector<128x128xf32>
    %c128_i32_14 = arith.constant 128 : i32
    %47 = vector.broadcast %c128_i32_14 : i32 to vector<128x128xi32>
    %48 = arith.select %46, %9, %47 : vector<128x128xi1>, vector<128x128xi32>
    %cst_15 = arith.constant dense<2147483647> : vector<128xi32>
    %49 = vector.multi_reduction <minsi>, %48, %cst_15 [1] : vector<128x128xi32> to vector<128xi32>
    %50 = vector.shape_cast %49 : vector<128xi32> to vector<128x1xi32>
    %51 = vector.broadcast %50 : vector<128x1xi32> to vector<128x128xi32>
    %52 = arith.cmpi eq, %9, %51 : vector<128x128xi32>
    %cst_16 = arith.constant 0xFF800000 : f32
    %53 = vector.broadcast %cst_16 : f32 to vector<128x128xf32>
    %54 = arith.select %52, %53, %42 : vector<128x128xi1>, vector<128x128xf32>
    %cst_17 = arith.constant dense<0xFF800000> : vector<128xf32>
    %55 = vector.multi_reduction <maximumf>, %54, %cst_17 [1] : vector<128x128xf32> to vector<128xf32>
    %56 = vector.shape_cast %55 : vector<128xf32> to vector<128x1xf32>
    %57 = vector.broadcast %56 : vector<128x1xf32> to vector<128x128xf32>
    %58 = arith.cmpf oeq, %54, %57 : vector<128x128xf32>
    %c128_i32_18 = arith.constant 128 : i32
    %59 = vector.broadcast %c128_i32_18 : i32 to vector<128x128xi32>
    %60 = arith.select %58, %9, %59 : vector<128x128xi1>, vector<128x128xi32>
    %cst_19 = arith.constant dense<2147483647> : vector<128xi32>
    %61 = vector.multi_reduction <minsi>, %60, %cst_19 [1] : vector<128x128xi32> to vector<128xi32>
    %62 = vector.shape_cast %61 : vector<128xi32> to vector<128x1xi32>
    %63 = tpu.concatenate %20, %32, %44, %56 in 1 : vector<128x1xf32>, vector<128x1xf32>, vector<128x1xf32>, vector<128x1xf32> -> vector<128x4xf32>
    %64 = tpu.concatenate %26, %38, %50, %62 in 1 : vector<128x1xi32>, vector<128x1xi32>, vector<128x1xi32>, vector<128x1xi32> -> vector<128x4xi32>
    %65 = tpu.bitcast %64 : vector<128x4xi32> -> vector<128x4xf32>
    %cst_20 = arith.constant 0.000000e+00 : f32
    %66 = vector.broadcast %cst_20 : f32 to vector<128x120xf32>
    %67 = tpu.concatenate %63, %65, %66 in 1 : vector<128x4xf32>, vector<128x4xf32>, vector<128x120xf32> -> vector<128x128xf32>
    %c0_21 = arith.constant 0 : index
    %c0_22 = arith.constant 0 : index
    %68 = vector.load %arg2[%c0_21, %c0_22] : memref<128x128xf32, #tpu.memory_space<vmem>>, vector<128x128xf32>
    tpu.vector_store %arg2[%c0_21, %c0_22], %67 {strides = array<i32>} : memref<128x128xf32, #tpu.memory_space<vmem>>, vector<128x128xf32>,
    return
  }
  func.func @transform_0(%arg0: i32) -> (i32, i32) {
    %c0_i32 = arith.constant 0 : i32
    %c0_i32_0 = arith.constant 0 : i32
    %c0_i32_1 = arith.constant 0 : i32
    return %c0_i32, %c0_i32_0 : i32, i32
  }
  func.func @transform_1(%arg0: i32) -> (i32, i32) {
    %c0_i32 = arith.constant 0 : i32
    %c0_i32_0 = arith.constant 0 : i32
    return %arg0, %c0_i32 : i32, i32
  }
}

</mosaic_0001>

<llo_original>
// kernel: tpu_custom_call.1
$region0: #{tpu_custom_call.1}
  #allocation0 [shape = 'u32[]', space=smem, size = 0x4, offset = 0x4, fixed_abs, tag = 'smem constant byte address 0x4 - core index']
  #allocation1 [shape = 'u32[144,128]{1,0:T(1,128)}', space=vmem, size = 0x12000, scoped, tag = 'internal scratch']
  %s0 = inlined_call_operand.hbm [shape: f32[128,128], index: 0, kind: input, shape index: {}]
  %s1 = inlined_call_operand.hbm [shape: f32[128,128], index: 1, kind: output, shape index: {}]
  %s2 = sld [smem:[#allocation0]]
  $region18: #{tpu_custom_call.1} parent=0
    _
  %s4 = ssub.s32 1, %s2
  %s5 = scalar_select 0, %s4, %s2
  $region1: #{tpu_custom_call.1} parent=0
    #allocation2 [shape = 'u8[65536]{0}', space=vmem, size = 0x10000, scoped, tag = 'input window, operand 0, single buffered']
    #allocation3 [shape = 's32[1]{0}', space=sflag, size = 0x4, scoped, tag = 'scoped memory for tpu_custom_call.1']
    #allocation4 [shape = 's32[1]{0}', space=sflag, size = 0x4, scoped, tag = 'scoped memory for tpu_custom_call.1']
    #allocation5 [shape = 'u8[65536]{0}', space=vmem, size = 0x10000, scoped, tag = 'output window, operand 0, single buffered']
    %6 = vsyncpa [#allocation3], 0
    %7 = vsyncpa [#allocation4], 0
    // Predicated region
    $region2: #{tpu_custom_call.1} parent=1 // pred_check
      _
    $region3: #{tpu_custom_call.1} parent=1 // pred_check_branch
      %9 = sbr.rel (0) target = $region5
    $region4: #{tpu_custom_call.1} parent=1 // pred_region
      %s11 = ssub.s32 2048, 2048
      %12 = vsyncadd [#allocation3], %s11
      %s13 = sshll.u32 [#allocation2], 4
      %s14 = int_to_ptr.vmem [resolvable:$true] %s13
      %19 = dma.hbm_to_vmem [thread:$0]  %s0, 2048, %s14, [#allocation3], 128, 128, 8
    $region5: #{tpu_custom_call.1} parent=1 // pred_fallthru
      _
    // Predicated region
    $region6: #{tpu_custom_call.1} parent=1 // pred_check
      _
    $region7: #{tpu_custom_call.1} parent=1 // pred_check_branch
      %21 = sbr.rel (0) target = $region9
    $region8: #{tpu_custom_call.1} parent=1 // pred_region
      %22 = dma.done [#allocation3], 2048
    $region9: #{tpu_custom_call.1} parent=1 // pred_fallthru
      _
    %s23 = smul.u32 0, 128
    %s24 = scalar_lea.vmem [#allocation2], %s23
    %v25 = vld [vmem:[%s24] sm:$0xff]
    %v26 = vld [vmem:[%s24 + $0x8] sm:$0xff]
    %v27 = vld [vmem:[%s24 + $0x10] sm:$0xff]
    %v28 = vld [vmem:[%s24 + $0x18] sm:$0xff]
    %v29 = vld [vmem:[%s24 + $0x20] sm:$0xff]
    %v30 = vld [vmem:[%s24 + $0x28] sm:$0xff]
    %v31 = vld [vmem:[%s24 + $0x30] sm:$0xff]
    %v32 = vld [vmem:[%s24 + $0x38] sm:$0xff]
    %v33 = vld [vmem:[%s24 + $0x40] sm:$0xff]
    %v34 = vld [vmem:[%s24 + $0x48] sm:$0xff]
    %v35 = vld [vmem:[%s24 + $0x50] sm:$0xff]
    %v36 = vld [vmem:[%s24 + $0x58] sm:$0xff]
    %v37 = vld [vmem:[%s24 + $0x60] sm:$0xff]
    %v38 = vld [vmem:[%s24 + $0x68] sm:$0xff]
    %v39 = vld [vmem:[%s24 + $0x70] sm:$0xff]
    %v40 = vld [vmem:[%s24 + $0x78] sm:$0xff]
    %v41 = vld [vmem:[#allocation2] sm:$0xff]
    %v42 = vld [vmem:[#allocation2 + $0x8] sm:$0xff]
    %v43 = vld [vmem:[#allocation2 + $0x10] sm:$0xff]
    %v44 = vld [vmem:[#allocation2 + $0x18] sm:$0xff]
    %v45 = vld [vmem:[#allocation2 + $0x20] sm:$0xff]
    %v46 = vld [vmem:[#allocation2 + $0x28] sm:$0xff]
    %v47 = vld [vmem:[#allocation2 + $0x30] sm:$0xff]
    %v48 = vld [vmem:[#allocation2 + $0x38] sm:$0xff]
    %v49 = vld [vmem:[#allocation2 + $0x40] sm:$0xff]
    %v50 = vld [vmem:[#allocation2 + $0x48] sm:$0xff]
    %v51 = vld [vmem:[#allocation2 + $0x50] sm:$0xff]
    %v52 = vld [vmem:[#allocation2 + $0x58] sm:$0xff]
    %v53 = vld [vmem:[#allocation2 + $0x60] sm:$0xff]
    %v54 = vld [vmem:[#allocation2 + $0x68] sm:$0xff]
    %v55 = vld [vmem:[#allocation2 + $0x70] sm:$0xff]
    %v56 = vld [vmem:[#allocation2 + $0x78] sm:$0xff]
    %57 = vmatprep.subr.mxu0 0.0
    %58 = vmatpush1.xpose.msra.mxu0 %v41
    %59 = vmatprep.subr.mxu0 0.0
    %60 = vmatpush1.xpose.msra.mxu0 %v42
    %61 = vmatprep.subr.mxu0 0.0
    %62 = vmatpush1.xpose.msra.mxu0 %v43
    %63 = vmatprep.subr.mxu0 0.0
    %64 = vmatpush1.xpose.msra.mxu0 %v44
    %65 = vmatprep.subr.mxu0 0.0
    %66 = vmatpush1.xpose.msra.mxu0 %v45
    %67 = vmatprep.subr.mxu0 0.0
    %68 = vmatpush1.xpose.msra.mxu0 %v46
    %69 = vmatprep.subr.mxu0 0.0
    %70 = vmatpush1.xpose.msra.mxu0 %v47
    %71 = vmatprep.subr.mxu0 0.0
    %72 = vmatpush1.xpose.msra.mxu0 %v48
    %73 = vmatprep.subr.mxu0 0.0
    %74 = vmatpush1.xpose.msra.mxu0 %v49
    %75 = vmatprep.subr.mxu0 0.0
    %76 = vmatpush1.xpose.msra.mxu0 %v50
    %77 = vmatprep.subr.mxu0 0.0
    %78 = vmatpush1.xpose.msra.mxu0 %v51
    %79 = vmatprep.subr.mxu0 0.0
    %80 = vmatpush1.xpose.msra.mxu0 %v52
    %81 = vmatprep.subr.mxu0 0.0
    %82 = vmatpush1.xpose.msra.mxu0 %v53
    %83 = vmatprep.subr.mxu0 0.0
    %84 = vmatpush1.xpose.msra.mxu0 %v54
    %85 = vmatprep.subr.mxu0 0.0
    %86 = vmatpush1.xpose.msra.mxu0 %v55
    %87 = vmatprep.subr.mxu0 0.0
    %88 = vmatpush1.xpose.msra.mxu0 %v56
    %89 = vmatprep.subr.mxu0 0.0
    %90 = vmatpush1.xpose.msra.mxu0 0.0
    %91 = vmatprep.subr.mxu0 0.0
    %92 = vmatpush1.xpose.msra.mxu0 0.0
    %93 = vmatprep.subr.mxu0 0.0
    %94 = vmatpush1.xpose.msra.mxu0 0.0
    %95 = vmatprep.subr.mxu0 0.0
    %96 = vmatpush1.xpose.msra.mxu0 0.0
    %97 = vmatprep.subr.mxu0 0.0
    %98 = vmatpush1.xpose.msra.mxu0 0.0
    %99 = vmatprep.subr.mxu0 0.0
    %100 = vmatpush1.xpose.msra.mxu0 0.0
    %101 = vmatprep.subr.mxu0 0.0
    %102 = vmatpush1.xpose.msra.mxu0 0.0
    %103 = vmatprep.subr.mxu0 0.0
    %104 = vmatpush1.xpose.msra.mxu0 0.0
    %105 = vmatprep.subr.mxu0 0.0
    %106 = vmatpush1.xpose.msra.mxu0 0.0
    %107 = vmatprep.subr.mxu0 0.0
    %108 = vmatpush1.xpose.msra.mxu0 0.0
    %109 = vmatprep.subr.mxu0 0.0
    %110 = vmatpush1.xpose.msra.mxu0 0.0
    %111 = vmatprep.subr.mxu0 0.0
    %112 = vmatpush1.xpose.msra.mxu0 0.0
    %113 = vmatprep.subr.mxu0 0.0
    %114 = vmatpush1.xpose.msra.mxu0 0.0
    %115 = vmatprep.subr.mxu0 0.0
    %116 = vmatpush1.xpose.msra.mxu0 0.0
    %117 = vmatprep.subr.mxu0 0.0
    %118 = vmatpush1.xpose.msra.mxu0 0.0
    %119 = vmatprep.subr.mxu0 0.0
    %120 = vmatpush1.xpose.msra.mxu0 0.0
    %121 = vmatprep.mubr.f32.mxu0 0.0
    %122 = vmatmul.mubr.f32.gmra.mrb[0].mxu0 %v25
    %v123 = vpop.f32.mrb[0].mxu0
    %v124 = vadd.f32 0.0, %v123
    %v125 = vpop.f32.mrb[0].mxu0
    %126 = vmatprep.mubr.f32.mxu0 0.0
    %127 = vmatmul.mubr.f32.gmra.mrb[0].mxu0 %v26
    %v128 = vpop.f32.mrb[0].mxu0
    %v129 = vadd.f32 0.0, %v128
    %v130 = vpop.f32.mrb[0].mxu0
    %131 = vmatprep.mubr.f32.mxu0 0.0
    %132 = vmatmul.mubr.f32.gmra.mrb[0].mxu0 %v27
    %v133 = vpop.f32.mrb[0].mxu0
    %v134 = vadd.f32 0.0, %v133
    %v135 = vpop.f32.mrb[0].mxu0
    %136 = vmatprep.mubr.f32.mxu0 0.0
    %137 = vmatmul.mubr.f32.gmra.mrb[0].mxu0 %v28
    %v138 = vpop.f32.mrb[0].mxu0
    %v139 = vadd.f32 0.0, %v138
    %v140 = vpop.f32.mrb[0].mxu0
    %141 = vmatprep.mubr.f32.mxu0 0.0
    %142 = vmatmul.mubr.f32.gmra.mrb[0].mxu0 %v29
    %v143 = vpop.f32.mrb[0].mxu0
    %v144 = vadd.f32 0.0, %v143
    %v145 = vpop.f32.mrb[0].mxu0
    %146 = vmatprep.mubr.f32.mxu0 0.0
    %147 = vmatmul.mubr.f32.gmra.mrb[0].mxu0 %v30
    %v148 = vpop.f32.mrb[0].mxu0
    %v149 = vadd.f32 0.0, %v148
    %v150 = vpop.f32.mrb[0].mxu0
    %151 = vmatprep.mubr.f32.mxu0 0.0
    %152 = vmatmul.mubr.f32.gmra.mrb[0].mxu0 %v31
    %v153 = vpop.f32.mrb[0].mxu0
    %v154 = vadd.f32 0.0, %v153
    %v155 = vpop.f32.mrb[0].mxu0
    %156 = vmatprep.mubr.f32.mxu0 0.0
    %157 = vmatmul.mubr.f32.gmra.mrb[0].mxu0 %v32
    %v158 = vpop.f32.mrb[0].mxu0
    %v159 = vadd.f32 0.0, %v158
    %v160 = vpop.f32.mrb[0].mxu0
    %161 = vmatprep.mubr.f32.mxu0 0.0
    %162 = vmatmul.mubr.f32.gmra.mrb[0].mxu0 %v33
    %v163 = vpop.f32.mrb[0].mxu0
    %v164 = vadd.f32 0.0, %v163
    %v165 = vpop.f32.mrb[0].mxu0
    %166 = vmatprep.mubr.f32.mxu0 0.0
    %167 = vmatmul.mubr.f32.gmra.mrb[0].mxu0 %v34
    %v168 = vpop.f32.mrb[0].mxu0
    %v169 = vadd.f32 0.0, %v168
    %v170 = vpop.f32.mrb[0].mxu0
    %171 = vmatprep.mubr.f32.mxu0 0.0
    %172 = vmatmul.mubr.f32.gmra.mrb[0].mxu0 %v35
    %v173 = vpop.f32.mrb[0].mxu0
    %v174 = vadd.f32 0.0, %v173
    %v175 = vpop.f32.mrb[0].mxu0
    %176 = vmatprep.mubr.f32.mxu0 0.0
    %177 = vmatmul.mubr.f32.gmra.mrb[0].mxu0 %v36
    %v178 = vpop.f32.mrb[0].mxu0
    %v179 = vadd.f32 0.0, %v178
    %v180 = vpop.f32.mrb[0].mxu0
    %181 = vmatprep.mubr.f32.mxu0 0.0
    %182 = vmatmul.mubr.f32.gmra.mrb[0].mxu0 %v37
    %v183 = vpop.f32.mrb[0].mxu0
    %v184 = vadd.f32 0.0, %v183
    %v185 = vpop.f32.mrb[0].mxu0
    %186 = vmatprep.mubr.f32.mxu0 0.0
    %187 = vmatmul.mubr.f32.gmra.mrb[0].mxu0 %v38
    %v188 = vpop.f32.mrb[0].mxu0
    %v189 = vadd.f32 0.0, %v188
    %v190 = vpop.f32.mrb[0].mxu0
    %191 = vmatprep.mubr.f32.mxu0 0.0
    %192 = vmatmul.mubr.f32.gmra.mrb[0].mxu0 %v39
    %v193 = vpop.f32.mrb[0].mxu0
    %v194 = vadd.f32 0.0, %v193
    %v195 = vpop.f32.mrb[0].mxu0
    %196 = vmatprep.mubr.f32.mxu0 0.0
    %197 = vmatmul.mubr.f32.gmra.mrb[0].mxu0 %v40
    %v198 = vpop.f32.mrb[0].mxu0
    %v199 = vadd.f32 0.0, %v198
    %v200 = vpop.f32.mrb[0].mxu0
    %201 = vdwg.mxu0
    %v202 = vmax.f32 %v124, 0.0
    %v203 = vmax.f32 %v129, 0.0
    %v204 = vmax.f32 %v134, 0.0
    %v205 = vmax.f32 %v139, 0.0
    %v206 = vmax.f32 %v144, 0.0
    %v207 = vmax.f32 %v149, 0.0
    %v208 = vmax.f32 %v154, 0.0
    %v209 = vmax.f32 %v159, 0.0
    %v210 = vmax.f32 %v164, 0.0
    %v211 = vmax.f32 %v169, 0.0
    %v212 = vmax.f32 %v174, 0.0
    %v213 = vmax.f32 %v179, 0.0
    %v214 = vmax.f32 %v184, 0.0
    %v215 = vmax.f32 %v189, 0.0
    %v216 = vmax.f32 %v194, 0.0
    %v217 = vmax.f32 %v199, 0.0
    %v218 = vlaneseq
    %v219 = vshrl.u32 %v218, 7
    %v220 = vadd.s32 %v219, 8
    %v221 = vadd.s32 %v219, 16
    %v222 = vadd.s32 %v219, 24
    %v223 = vadd.s32 %v219, 32
    %v224 = vadd.s32 %v219, 40
    %v225 = vadd.s32 %v219, 48
    %v226 = vadd.s32 %v219, 56
    %v227 = vadd.s32 %v219, 64
    %v228 = vadd.s32 %v219, 72
    %v229 = vadd.s32 %v219, 80
    %v230 = vadd.s32 %v219, 88
    %v231 = vadd.s32 %v219, 96
    %v232 = vadd.s32 %v219, 104
    %v233 = vadd.s32 %v219, 112
    %v234 = vadd.s32 %v219, 120
    %v235 = vlaneseq
    %v236 = vand.u32 %v235, 127
    %v237 = vstv %s23
    %v238 = vadd.s32 %v219, %v237
    %v239 = vadd.s32 %v220, %v237
    %v240 = vadd.s32 %v221, %v237
    %v241 = vadd.s32 %v222, %v237
    %v242 = vadd.s32 %v223, %v237
    %v243 = vadd.s32 %v224, %v237
    %v244 = vadd.s32 %v225, %v237
    %v245 = vadd.s32 %v226, %v237
    %v246 = vadd.s32 %v227, %v237
    %v247 = vadd.s32 %v228, %v237
    %v248 = vadd.s32 %v229, %v237
    %v249 = vadd.s32 %v230, %v237
    %v250 = vadd.s32 %v231, %v237
    %v251 = vadd.s32 %v232, %v237
    %v252 = vadd.s32 %v233, %v237
    %v253 = vadd.s32 %v234, %v237
    %vm254 = vcmp.eq.s32.totalorder %v238, %v236
    %vm255 = vcmp.eq.s32.totalorder %v239, %v236
    %vm256 = vcmp.eq.s32.totalorder %v240, %v236
    %vm257 = vcmp.eq.s32.totalorder %v241, %v236
    %vm258 = vcmp.eq.s32.totalorder %v242, %v236
    %vm259 = vcmp.eq.s32.totalorder %v243, %v236
    %vm260 = vcmp.eq.s32.totalorder %v244, %v236
    %vm261 = vcmp.eq.s32.totalorder %v245, %v236
    %vm262 = vcmp.eq.s32.totalorder %v246, %v236
    %vm263 = vcmp.eq.s32.totalorder %v247, %v236
    %vm264 = vcmp.eq.s32.totalorder %v248, %v236
    %vm265 = vcmp.eq.s32.totalorder %v249, %v236
    %vm266 = vcmp.eq.s32.totalorder %v250, %v236
    %vm267 = vcmp.eq.s32.totalorder %v251, %v236
    %vm268 = vcmp.eq.s32.totalorder %v252, %v236
    %vm269 = vcmp.eq.s32.totalorder %v253, %v236
    %vm270 = vcmp.ge.s32.totalorder %v236, 16
    %vm271 = vmor %vm254, %vm270
    %vm272 = vmor %vm255, %vm270
    %vm273 = vmor %vm256, %vm270
    %vm274 = vmor %vm257, %vm270
    %vm275 = vmor %vm258, %vm270
    %vm276 = vmor %vm259, %vm270
    %vm277 = vmor %vm260, %vm270
    %vm278 = vmor %vm261, %vm270
    %vm279 = vmor %vm262, %vm270
    %vm280 = vmor %vm263, %vm270
    %vm281 = vmor %vm264, %vm270
    %vm282 = vmor %vm265, %vm270
    %vm283 = vmor %vm266, %vm270
    %vm284 = vmor %vm267, %vm270
    %vm285 = vmor %vm268, %vm270
    %vm286 = vmor %vm269, %vm270
    %v287 = vsel %vm271, -inf, %v202
    %v288 = vsel %vm272, -inf, %v203
    %v289 = vsel %vm273, -inf, %v204
    %v290 = vsel %vm274, -inf, %v205
    %v291 = vsel %vm275, -inf, %v206
    %v292 = vsel %vm276, -inf, %v207
    %v293 = vsel %vm277, -inf, %v208
    %v294 = vsel %vm278, -inf, %v209
    %v295 = vsel %vm279, -inf, %v210
    %v296 = vsel %vm280, -inf, %v211
    %v297 = vsel %vm281, -inf, %v212
    %v298 = vsel %vm282, -inf, %v213
    %v299 = vsel %vm283, -inf, %v214
    %v300 = vsel %vm284, -inf, %v215
    %v301 = vsel %vm285, -inf, %v216
    %v302 = vsel %vm286, -inf, %v217
    %303 = vmax.xlane.f32.xlu0 %v287
    %v304 = vpop.xlane.xlu0 %303
    %305 = vmax.xlane.f32.xlu0 %v288
    %v306 = vpop.xlane.xlu0 %305
    %307 = vmax.xlane.f32.xlu0 %v289
    %v308 = vpop.xlane.xlu0 %307
    %309 = vmax.xlane.f32.xlu0 %v290
    %v310 = vpop.xlane.xlu0 %309
    %311 = vmax.xlane.f32.xlu0 %v291
    %v312 = vpop.xlane.xlu0 %311
    %313 = vmax.xlane.f32.xlu0 %v292
    %v314 = vpop.xlane.xlu0 %313
    %315 = vmax.xlane.f32.xlu0 %v293
    %v316 = vpop.xlane.xlu0 %315
    %317 = vmax.xlane.f32.xlu0 %v294
    %v318 = vpop.xlane.xlu0 %317
    %319 = vmax.xlane.f32.xlu0 %v295
    %v320 = vpop.xlane.xlu0 %319
    %321 = vmax.xlane.f32.xlu0 %v296
    %v322 = vpop.xlane.xlu0 %321
    %323 = vmax.xlane.f32.xlu0 %v297
    %v324 = vpop.xlane.xlu0 %323
    %325 = vmax.xlane.f32.xlu0 %v298
    %v326 = vpop.xlane.xlu0 %325
    %327 = vmax.xlane.f32.xlu0 %v299
    %v328 = vpop.xlane.xlu0 %327
    %329 = vmax.xlane.f32.xlu0 %v300
    %v330 = vpop.xlane.xlu0 %329
    %331 = vmax.xlane.f32.xlu0 %v301
    %v332 = vpop.xlane.xlu0 %331
    %333 = vmax.xlane.f32.xlu0 %v302
    %v334 = vpop.xlane.xlu0 %333
    %vm335 = vcmp.eq.f32.partialorder %v287, %v304
    %vm336 = vcmp.eq.f32.partialorder %v288, %v306
    %vm337 = vcmp.eq.f32.partialorder %v289, %v308
    %vm338 = vcmp.eq.f32.partialorder %v290, %v310
    %vm339 = vcmp.eq.f32.partialorder %v291, %v312
    %vm340 = vcmp.eq.f32.partialorder %v292, %v314
    %vm341 = vcmp.eq.f32.partialorder %v293, %v316
    %vm342 = vcmp.eq.f32.partialorder %v294, %v318
    %vm343 = vcmp.eq.f32.partialorder %v295, %v320
    %vm344 = vcmp.eq.f32.partialorder %v296, %v322
    %vm345 = vcmp.eq.f32.partialorder %v297, %v324
    %vm346 = vcmp.eq.f32.partialorder %v298, %v326
    %vm347 = vcmp.eq.f32.partialorder %v299, %v328
    %vm348 = vcmp.eq.f32.partialorder %v300, %v330
    %vm349 = vcmp.eq.f32.partialorder %v301, %v332
    %vm350 = vcmp.eq.f32.partialorder %v302, %v334
    %v351 = vsel %vm335, %v236, 128
    %v352 = vsel %vm336, %v236, 128
    %v353 = vsel %vm337, %v236, 128
    %v354 = vsel %vm338, %v236, 128
    %v355 = vsel %vm339, %v236, 128
    %v356 = vsel %vm340, %v236, 128
    %v357 = vsel %vm341, %v236, 128
    %v358 = vsel %vm342, %v236, 128
    %v359 = vsel %vm343, %v236, 128
    %v360 = vsel %vm344, %v236, 128
    %v361 = vsel %vm345, %v236, 128
    %v362 = vsel %vm346, %v236, 128
    %v363 = vsel %vm347, %v236, 128
    %v364 = vsel %vm348, %v236, 128
    %v365 = vsel %vm349, %v236, 128
    %v366 = vsel %vm350, %v236, 128
    %v367 = vand.u32 %v351, 65535
    %v368 = vshra.s32 %v351, 16
    %v369 = vcvt.s32.f32 %v367
    %v370 = vcvt.s32.f32 %v368
    %371 = vmin.xlane.f32.xlu0 %v370
    %v372 = vpop.xlane.xlu0 %371
    %vm373 = vcmp.eq.f32.partialorder %v370, %v372
    %v374 = vsel %vm373, %v369, inf
    %375 = vmin.xlane.f32.xlu0 %v374
    %v376 = vpop.xlane.xlu0 %375
    %v377 = vcvt.f32.s32 %v376
    %v378 = vcvt.f32.s32 %v372
    %v379 = vshll.u32 %v378, 16
    %v380 = vadd.s32 %v379, %v377
    %v381 = vand.u32 %v352, 65535
    %v382 = vshra.s32 %v352, 16
    %v383 = vcvt.s32.f32 %v381
    %v384 = vcvt.s32.f32 %v382
    %385 = vmin.xlane.f32.xlu0 %v384
    %v386 = vpop.xlane.xlu0 %385
    %vm387 = vcmp.eq.f32.partialorder %v384, %v386
    %v388 = vsel %vm387, %v383, inf
    %389 = vmin.xlane.f32.xlu0 %v388
    %v390 = vpop.xlane.xlu0 %389
    %v391 = vcvt.f32.s32 %v390
    %v392 = vcvt.f32.s32 %v386
    %v393 = vshll.u32 %v392, 16
    %v394 = vadd.s32 %v393, %v391
    %v395 = vand.u32 %v353, 65535
    %v396 = vshra.s32 %v353, 16
    %v397 = vcvt.s32.f32 %v395
    %v398 = vcvt.s32.f32 %v396
    %399 = vmin.xlane.f32.xlu0 %v398
    %v400 = vpop.xlane.xlu0 %399
    %vm401 = vcmp.eq.f32.partialorder %v398, %v400
    %v402 = vsel %vm401, %v397, inf
    %403 = vmin.xlane.f32.xlu0 %v402
    %v404 = vpop.xlane.xlu0 %403
    %v405 = vcvt.f32.s32 %v404
    %v406 = vcvt.f32.s32 %v400
    %v407 = vshll.u32 %v406, 16
    %v408 = vadd.s32 %v407, %v405
    %v409 = vand.u32 %v354, 65535
    %v410 = vshra.s32 %v354, 16
    %v411 = vcvt.s32.f32 %v409
    %v412 = vcvt.s32.f32 %v410
    %413 = vmin.xlane.f32.xlu0 %v412
    %v414 = vpop.xlane.xlu0 %413
    %vm415 = vcmp.eq.f32.partialorder %v412, %v414
    %v416 = vsel %vm415, %v411, inf
    %417 = vmin.xlane.f32.xlu0 %v416
    %v418 = vpop.xlane.xlu0 %417
    %v419 = vcvt.f32.s32 %v418
    %v420 = vcvt.f32.s32 %v414
    %v421 = vshll.u32 %v420, 16
    %v422 = vadd.s32 %v421, %v419
    %v423 = vand.u32 %v355, 65535
    %v424 = vshra.s32 %v355, 16
    %v425 = vcvt.s32.f32 %v423
    %v426 = vcvt.s32.f32 %v424
    %427 = vmin.xlane.f32.xlu0 %v426
    %v428 = vpop.xlane.xlu0 %427
    %vm429 = vcmp.eq.f32.partialorder %v426, %v428
    %v430 = vsel %vm429, %v425, inf
    %431 = vmin.xlane.f32.xlu0 %v430
    %v432 = vpop.xlane.xlu0 %431
    %v433 = vcvt.f32.s32 %v432
    %v434 = vcvt.f32.s32 %v428
    %v435 = vshll.u32 %v434, 16
    %v436 = vadd.s32 %v435, %v433
    %v437 = vand.u32 %v356, 65535
    %v438 = vshra.s32 %v356, 16
    %v439 = vcvt.s32.f32 %v437
    %v440 = vcvt.s32.f32 %v438
    %441 = vmin.xlane.f32.xlu0 %v440
    %v442 = vpop.xlane.xlu0 %441
    %vm443 = vcmp.eq.f32.partialorder %v440, %v442
    %v444 = vsel %vm443, %v439, inf
    %445 = vmin.xlane.f32.xlu0 %v444
    %v446 = vpop.xlane.xlu0 %445
    %v447 = vcvt.f32.s32 %v446
    %v448 = vcvt.f32.s32 %v442
    %v449 = vshll.u32 %v448, 16
    %v450 = vadd.s32 %v449, %v447
    %v451 = vand.u32 %v357, 65535
    %v452 = vshra.s32 %v357, 16
    %v453 = vcvt.s32.f32 %v451
    %v454 = vcvt.s32.f32 %v452
    %455 = vmin.xlane.f32.xlu0 %v454
    %v456 = vpop.xlane.xlu0 %455
    %vm457 = vcmp.eq.f32.partialorder %v454, %v456
    %v458 = vsel %vm457, %v453, inf
    %459 = vmin.xlane.f32.xlu0 %v458
    %v460 = vpop.xlane.xlu0 %459
    %v461 = vcvt.f32.s32 %v460
    %v462 = vcvt.f32.s32 %v456
    %v463 = vshll.u32 %v462, 16
    %v464 = vadd.s32 %v463, %v461
    %v465 = vand.u32 %v358, 65535
    %v466 = vshra.s32 %v358, 16
    %v467 = vcvt.s32.f32 %v465
    %v468 = vcvt.s32.f32 %v466
    %469 = vmin.xlane.f32.xlu0 %v468
    %v470 = vpop.xlane.xlu0 %469
    %vm471 = vcmp.eq.f32.partialorder %v468, %v470
    %v472 = vsel %vm471, %v467, inf
    %473 = vmin.xlane.f32.xlu0 %v472
    %v474 = vpop.xlane.xlu0 %473
    %v475 = vcvt.f32.s32 %v474
    %v476 = vcvt.f32.s32 %v470
    %v477 = vshll.u32 %v476, 16
    %v478 = vadd.s32 %v477, %v475
    %v479 = vand.u32 %v359, 65535
    %v480 = vshra.s32 %v359, 16
    %v481 = vcvt.s32.f32 %v479
    %v482 = vcvt.s32.f32 %v480
    %483 = vmin.xlane.f32.xlu0 %v482
    %v484 = vpop.xlane.xlu0 %483
    %vm485 = vcmp.eq.f32.partialorder %v482, %v484
    %v486 = vsel %vm485, %v481, inf
    %487 = vmin.xlane.f32.xlu0 %v486
    %v488 = vpop.xlane.xlu0 %487
    %v489 = vcvt.f32.s32 %v488
    %v490 = vcvt.f32.s32 %v484
    %v491 = vshll.u32 %v490, 16
    %v492 = vadd.s32 %v491, %v489
    %v493 = vand.u32 %v360, 65535
    %v494 = vshra.s32 %v360, 16
    %v495 = vcvt.s32.f32 %v493
    %v496 = vcvt.s32.f32 %v494
    %497 = vmin.xlane.f32.xlu0 %v496
    %v498 = vpop.xlane.xlu0 %497
    %vm499 = vcmp.eq.f32.partialorder %v496, %v498
    %v500 = vsel %vm499, %v495, inf
    %501 = vmin.xlane.f32.xlu0 %v500
    %v502 = vpop.xlane.xlu0 %501
    %v503 = vcvt.f32.s32 %v502
    %v504 = vcvt.f32.s32 %v498
    %v505 = vshll.u32 %v504, 16
    %v506 = vadd.s32 %v505, %v503
    %v507 = vand.u32 %v361, 65535
    %v508 = vshra.s32 %v361, 16
    %v509 = vcvt.s32.f32 %v507
    %v510 = vcvt.s32.f32 %v508
    %511 = vmin.xlane.f32.xlu0 %v510
    %v512 = vpop.xlane.xlu0 %511
    %vm513 = vcmp.eq.f32.partialorder %v510, %v512
    %v514 = vsel %vm513, %v509, inf
    %515 = vmin.xlane.f32.xlu0 %v514
    %v516 = vpop.xlane.xlu0 %515
    %v517 = vcvt.f32.s32 %v516
    %v518 = vcvt.f32.s32 %v512
    %v519 = vshll.u32 %v518, 16
    %v520 = vadd.s32 %v519, %v517
    %v521 = vand.u32 %v362, 65535
    %v522 = vshra.s32 %v362, 16
    %v523 = vcvt.s32.f32 %v521
    %v524 = vcvt.s32.f32 %v522
    %525 = vmin.xlane.f32.xlu0 %v524
    %v526 = vpop.xlane.xlu0 %525
    %vm527 = vcmp.eq.f32.partialorder %v524, %v526
    %v528 = vsel %vm527, %v523, inf
    %529 = vmin.xlane.f32.xlu0 %v528
    %v530 = vpop.xlane.xlu0 %529
    %v531 = vcvt.f32.s32 %v530
    %v532 = vcvt.f32.s32 %v526
    %v533 = vshll.u32 %v532, 16
    %v534 = vadd.s32 %v533, %v531
    %v535 = vand.u32 %v363, 65535
    %v536 = vshra.s32 %v363, 16
    %v537 = vcvt.s32.f32 %v535
    %v538 = vcvt.s32.f32 %v536
    %539 = vmin.xlane.f32.xlu0 %v538
    %v540 = vpop.xlane.xlu0 %539
    %vm541 = vcmp.eq.f32.partialorder %v538, %v540
    %v542 = vsel %vm541, %v537, inf
    %543 = vmin.xlane.f32.xlu0 %v542
    %v544 = vpop.xlane.xlu0 %543
    %v545 = vcvt.f32.s32 %v544
    %v546 = vcvt.f32.s32 %v540
    %v547 = vshll.u32 %v546, 16
    %v548 = vadd.s32 %v547, %v545
    %v549 = vand.u32 %v364, 65535
    %v550 = vshra.s32 %v364, 16
    %v551 = vcvt.s32.f32 %v549
    %v552 = vcvt.s32.f32 %v550
    %553 = vmin.xlane.f32.xlu0 %v552
    %v554 = vpop.xlane.xlu0 %553
    %vm555 = vcmp.eq.f32.partialorder %v552, %v554
    %v556 = vsel %vm555, %v551, inf
    %557 = vmin.xlane.f32.xlu0 %v556
    %v558 = vpop.xlane.xlu0 %557
    %v559 = vcvt.f32.s32 %v558
    %v560 = vcvt.f32.s32 %v554
    %v561 = vshll.u32 %v560, 16
    %v562 = vadd.s32 %v561, %v559
    %v563 = vand.u32 %v365, 65535
    %v564 = vshra.s32 %v365, 16
    %v565 = vcvt.s32.f32 %v563
    %v566 = vcvt.s32.f32 %v564
    %567 = vmin.xlane.f32.xlu0 %v566
    %v568 = vpop.xlane.xlu0 %567
    %vm569 = vcmp.eq.f32.partialorder %v566, %v568
    %v570 = vsel %vm569, %v565, inf
    %571 = vmin.xlane.f32.xlu0 %v570
    %v572 = vpop.xlane.xlu0 %571
    %v573 = vcvt.f32.s32 %v572
    %v574 = vcvt.f32.s32 %v568
    %v575 = vshll.u32 %v574, 16
    %v576 = vadd.s32 %v575, %v573
    %v577 = vand.u32 %v366, 65535
    %v578 = vshra.s32 %v366, 16
    %v579 = vcvt.s32.f32 %v577
    %v580 = vcvt.s32.f32 %v578
    %581 = vmin.xlane.f32.xlu0 %v580
    %v582 = vpop.xlane.xlu0 %581
    %vm583 = vcmp.eq.f32.partialorder %v580, %v582
    %v584 = vsel %vm583, %v579, inf
    %585 = vmin.xlane.f32.xlu0 %v584
    %v586 = vpop.xlane.xlu0 %585
    %v587 = vcvt.f32.s32 %v586
    %v588 = vcvt.f32.s32 %v582
    %v589 = vshll.u32 %v588, 16
    %v590 = vadd.s32 %v589, %v587
    %vm591 = vcmp.eq.s32.totalorder %v236, %v380
    %vm592 = vcmp.eq.s32.totalorder %v236, %v394
    %vm593 = vcmp.eq.s32.totalorder %v236, %v408
    %vm594 = vcmp.eq.s32.totalorder %v236, %v422
    %vm595 = vcmp.eq.s32.totalorder %v236, %v436
    %vm596 = vcmp.eq.s32.totalorder %v236, %v450
    %vm597 = vcmp.eq.s32.totalorder %v236, %v464
    %vm598 = vcmp.eq.s32.totalorder %v236, %v478
    %vm599 = vcmp.eq.s32.totalorder %v236, %v492
    %vm600 = vcmp.eq.s32.totalorder %v236, %v506
    %vm601 = vcmp.eq.s32.totalorder %v236, %v520
    %vm602 = vcmp.eq.s32.totalorder %v236, %v534
    %vm603 = vcmp.eq.s32.totalorder %v236, %v548
    %vm604 = vcmp.eq.s32.totalorder %v236, %v562
    %vm605 = vcmp.eq.s32.totalorder %v236, %v576
    %vm606 = vcmp.eq.s32.totalorder %v236, %v590
    %v607 = vsel %vm591, -inf, %v287
    %v608 = vsel %vm592, -inf, %v288
    %v609 = vsel %vm593, -inf, %v289
    %v610 = vsel %vm594, -inf, %v290
    %v611 = vsel %vm595, -inf, %v291
    %v612 = vsel %vm596, -inf, %v292
    %v613 = vsel %vm597, -inf, %v293
    %v614 = vsel %vm598, -inf, %v294
    %v615 = vsel %vm599, -inf, %v295
    %v616 = vsel %vm600, -inf, %v296
    %v617 = vsel %vm601, -inf, %v297
    %v618 = vsel %vm602, -inf, %v298
    %v619 = vsel %vm603, -inf, %v299
    %v620 = vsel %vm604, -inf, %v300
    %v621 = vsel %vm605, -inf, %v301
    %v622 = vsel %vm606, -inf, %v302
    %623 = vmax.xlane.f32.xlu0 %v607
    %v624 = vpop.xlane.xlu0 %623
    %625 = vmax.xlane.f32.xlu0 %v608
    %v626 = vpop.xlane.xlu0 %625
    %627 = vmax.xlane.f32.xlu0 %v609
    %v628 = vpop.xlane.xlu0 %627
    %629 = vmax.xlane.f32.xlu0 %v610
    %v630 = vpop.xlane.xlu0 %629
    %631 = vmax.xlane.f32.xlu0 %v611
    %v632 = vpop.xlane.xlu0 %631
    %633 = vmax.xlane.f32.xlu0 %v612
    %v634 = vpop.xlane.xlu0 %633
    %635 = vmax.xlane.f32.xlu0 %v613
    %v636 = vpop.xlane.xlu0 %635
    %637 = vmax.xlane.f32.xlu0 %v614
    %v638 = vpop.xlane.xlu0 %637
    %639 = vmax.xlane.f32.xlu0 %v615
    %v640 = vpop.xlane.xlu0 %639
    %641 = vmax.xlane.f32.xlu0 %v616
    %v642 = vpop.xlane.xlu0 %641
    %643 = vmax.xlane.f32.xlu0 %v617
    %v644 = vpop.xlane.xlu0 %643
    %645 = vmax.xlane.f32.xlu0 %v618
    %v646 = vpop.xlane.xlu0 %645
    %647 = vmax.xlane.f32.xlu0 %v619
    %v648 = vpop.xlane.xlu0 %647
    %649 = vmax.xlane.f32.xlu0 %v620
    %v650 = vpop.xlane.xlu0 %649
    %651 = vmax.xlane.f32.xlu0 %v621
    %v652 = vpop.xlane.xlu0 %651
    %653 = vmax.xlane.f32.xlu0 %v622
    %v654 = vpop.xlane.xlu0 %653
    %vm655 = vcmp.eq.f32.partialorder %v607, %v624
    %vm656 = vcmp.eq.f32.partialorder %v608, %v626
    %vm657 = vcmp.eq.f32.partialorder %v609, %v628
    %vm658 = vcmp.eq.f32.partialorder %v610, %v630
    %vm659 = vcmp.eq.f32.partialorder %v611, %v632
    %vm660 = vcmp.eq.f32.partialorder %v612, %v634
    %vm661 = vcmp.eq.f32.partialorder %v613, %v636
    %vm662 = vcmp.eq.f32.partialorder %v614, %v638
    %vm663 = vcmp.eq.f32.partialorder %v615, %v640
    %vm664 = vcmp.eq.f32.partialorder %v616, %v642
    %vm665 = vcmp.eq.f32.partialorder %v617, %v644
    %vm666 = vcmp.eq.f32.partialorder %v618, %v646
    %vm667 = vcmp.eq.f32.partialorder %v619, %v648
    %vm668 = vcmp.eq.f32.partialorder %v620, %v650
    %vm669 = vcmp.eq.f32.partialorder %v621, %v652
    %vm670 = vcmp.eq.f32.partialorder %v622, %v654
    %v671 = vsel %vm655, %v236, 128
    %v672 = vsel %vm656, %v236, 128
    %v673 = vsel %vm657, %v236, 128
    %v674 = vsel %vm658, %v236, 128
    %v675 = vsel %vm659, %v236, 128
    %v676 = vsel %vm660, %v236, 128
    %v677 = vsel %vm661, %v236, 128
    %v678 = vsel %vm662, %v236, 128
    %v679 = vsel %vm663, %v236, 128
    %v680 = vsel %vm664, %v236, 128
    %v681 = vsel %vm665, %v236, 128
    %v682 = vsel %vm666, %v236, 128
    %v683 = vsel %vm667, %v236, 128
    %v684 = vsel %vm668, %v236, 128
    %v685 = vsel %vm669, %v236, 128
    %v686 = vsel %vm670, %v236, 128
    %v687 = vand.u32 %v671, 65535
    %v688 = vshra.s32 %v671, 16
    %v689 = vcvt.s32.f32 %v687
    %v690 = vcvt.s32.f32 %v688
    %691 = vmin.xlane.f32.xlu0 %v690
    %v692 = vpop.xlane.xlu0 %691
    %vm693 = vcmp.eq.f32.partialorder %v690, %v692
    %v694 = vsel %vm693, %v689, inf
    %695 = vmin.xlane.f32.xlu0 %v694
    %v696 = vpop.xlane.xlu0 %695
    %v697 = vcvt.f32.s32 %v696
    %v698 = vcvt.f32.s32 %v692
    %v699 = vshll.u32 %v698, 16
    %v700 = vadd.s32 %v699, %v697
    %v701 = vand.u32 %v672, 65535
    %v702 = vshra.s32 %v672, 16
    %v703 = vcvt.s32.f32 %v701
    %v704 = vcvt.s32.f32 %v702
    %705 = vmin.xlane.f32.xlu0 %v704
    %v706 = vpop.xlane.xlu0 %705
    %vm707 = vcmp.eq.f32.partialorder %v704, %v706
    %v708 = vsel %vm707, %v703, inf
    %709 = vmin.xlane.f32.xlu0 %v708
    %v710 = vpop.xlane.xlu0 %709
    %v711 = vcvt.f32.s32 %v710
    %v712 = vcvt.f32.s32 %v706
    %v713 = vshll.u32 %v712, 16
    %v714 = vadd.s32 %v713, %v711
    %v715 = vand.u32 %v673, 65535
    %v716 = vshra.s32 %v673, 16
    %v717 = vcvt.s32.f32 %v715
    %v718 = vcvt.s32.f32 %v716
    %719 = vmin.xlane.f32.xlu0 %v718
    %v720 = vpop.xlane.xlu0 %719
    %vm721 = vcmp.eq.f32.partialorder %v718, %v720
    %v722 = vsel %vm721, %v717, inf
    %723 = vmin.xlane.f32.xlu0 %v722
    %v724 = vpop.xlane.xlu0 %723
    %v725 = vcvt.f32.s32 %v724
    %v726 = vcvt.f32.s32 %v720
    %v727 = vshll.u32 %v726, 16
    %v728 = vadd.s32 %v727, %v725
    %v729 = vand.u32 %v674, 65535
    %v730 = vshra.s32 %v674, 16
    %v731 = vcvt.s32.f32 %v729
    %v732 = vcvt.s32.f32 %v730
    %733 = vmin.xlane.f32.xlu0 %v732
    %v734 = vpop.xlane.xlu0 %733
    %vm735 = vcmp.eq.f32.partialorder %v732, %v734
    %v736 = vsel %vm735, %v731, inf
    %737 = vmin.xlane.f32.xlu0 %v736
    %v738 = vpop.xlane.xlu0 %737
    %v739 = vcvt.f32.s32 %v738
    %v740 = vcvt.f32.s32 %v734
    %v741 = vshll.u32 %v740, 16
    %v742 = vadd.s32 %v741, %v739
    %v743 = vand.u32 %v675, 65535
    %v744 = vshra.s32 %v675, 16
    %v745 = vcvt.s32.f32 %v743
    %v746 = vcvt.s32.f32 %v744
    %747 = vmin.xlane.f32.xlu0 %v746
    %v748 = vpop.xlane.xlu0 %747
    %vm749 = vcmp.eq.f32.partialorder %v746, %v748
    %v750 = vsel %vm749, %v745, inf
    %751 = vmin.xlane.f32.xlu0 %v750
    %v752 = vpop.xlane.xlu0 %751
    %v753 = vcvt.f32.s32 %v752
    %v754 = vcvt.f32.s32 %v748
    %v755 = vshll.u32 %v754, 16
    %v756 = vadd.s32 %v755, %v753
    %v757 = vand.u32 %v676, 65535
    %v758 = vshra.s32 %v676, 16
    %v759 = vcvt.s32.f32 %v757
    %v760 = vcvt.s32.f32 %v758
    %761 = vmin.xlane.f32.xlu0 %v760
    %v762 = vpop.xlane.xlu0 %761
    %vm763 = vcmp.eq.f32.partialorder %v760, %v762
    %v764 = vsel %vm763, %v759, inf
    %765 = vmin.xlane.f32.xlu0 %v764
    %v766 = vpop.xlane.xlu0 %765
    %v767 = vcvt.f32.s32 %v766
    %v768 = vcvt.f32.s32 %v762
    %v769 = vshll.u32 %v768, 16
    %v770 = vadd.s32 %v769, %v767
    %v771 = vand.u32 %v677, 65535
    %v772 = vshra.s32 %v677, 16
    %v773 = vcvt.s32.f32 %v771
    %v774 = vcvt.s32.f32 %v772
    %775 = vmin.xlane.f32.xlu0 %v774
    %v776 = vpop.xlane.xlu0 %775
    %vm777 = vcmp.eq.f32.partialorder %v774, %v776
    %v778 = vsel %vm777, %v773, inf
    %779 = vmin.xlane.f32.xlu0 %v778
    %v780 = vpop.xlane.xlu0 %779
    %v781 = vcvt.f32.s32 %v780
    %v782 = vcvt.f32.s32 %v776
    %v783 = vshll.u32 %v782, 16
    %v784 = vadd.s32 %v783, %v781
    %v785 = vand.u32 %v678, 65535
    %v786 = vshra.s32 %v678, 16
    %v787 = vcvt.s32.f32 %v785
    %v788 = vcvt.s32.f32 %v786
    %789 = vmin.xlane.f32.xlu0 %v788
    %v790 = vpop.xlane.xlu0 %789
    %vm791 = vcmp.eq.f32.partialorder %v788, %v790
    %v792 = vsel %vm791, %v787, inf
    %793 = vmin.xlane.f32.xlu0 %v792
    %v794 = vpop.xlane.xlu0 %793
    %v795 = vcvt.f32.s32 %v794
    %v796 = vcvt.f32.s32 %v790
    %v797 = vshll.u32 %v796, 16
    %v798 = vadd.s32 %v797, %v795
    %v799 = vand.u32 %v679, 65535
    %v800 = vshra.s32 %v679, 16
    %v801 = vcvt.s32.f32 %v799
    %v802 = vcvt.s32.f32 %v800
    %803 = vmin.xlane.f32.xlu0 %v802
    %v804 = vpop.xlane.xlu0 %803
    %vm805 = vcmp.eq.f32.partialorder %v802, %v804
    %v806 = vsel %vm805, %v801, inf
    %807 = vmin.xlane.f32.xlu0 %v806
    %v808 = vpop.xlane.xlu0 %807
    %v809 = vcvt.f32.s32 %v808
    %v810 = vcvt.f32.s32 %v804
    %v811 = vshll.u32 %v810, 16
    %v812 = vadd.s32 %v811, %v809
    %v813 = vand.u32 %v680, 65535
    %v814 = vshra.s32 %v680, 16
    %v815 = vcvt.s32.f32 %v813
    %v816 = vcvt.s32.f32 %v814
    %817 = vmin.xlane.f32.xlu0 %v816
    %v818 = vpop.xlane.xlu0 %817
    %vm819 = vcmp.eq.f32.partialorder %v816, %v818
    %v820 = vsel %vm819, %v815, inf
    %821 = vmin.xlane.f32.xlu0 %v820
    %v822 = vpop.xlane.xlu0 %821
    %v823 = vcvt.f32.s32 %v822
    %v824 = vcvt.f32.s32 %v818
    %v825 = vshll.u32 %v824, 16
    %v826 = vadd.s32 %v825, %v823
    %v827 = vand.u32 %v681, 65535
    %v828 = vshra.s32 %v681, 16
    %v829 = vcvt.s32.f32 %v827
    %v830 = vcvt.s32.f32 %v828
    %831 = vmin.xlane.f32.xlu0 %v830
    %v832 = vpop.xlane.xlu0 %831
    %vm833 = vcmp.eq.f32.partialorder %v830, %v832
    %v834 = vsel %vm833, %v829, inf
    %835 = vmin.xlane.f32.xlu0 %v834
    %v836 = vpop.xlane.xlu0 %835
    %v837 = vcvt.f32.s32 %v836
    %v838 = vcvt.f32.s32 %v832
    %v839 = vshll.u32 %v838, 16
    %v840 = vadd.s32 %v839, %v837
    %v841 = vand.u32 %v682, 65535
    %v842 = vshra.s32 %v682, 16
    %v843 = vcvt.s32.f32 %v841
    %v844 = vcvt.s32.f32 %v842
    %845 = vmin.xlane.f32.xlu0 %v844
    %v846 = vpop.xlane.xlu0 %845
    %vm847 = vcmp.eq.f32.partialorder %v844, %v846
    %v848 = vsel %vm847, %v843, inf
    %849 = vmin.xlane.f32.xlu0 %v848
    %v850 = vpop.xlane.xlu0 %849
    %v851 = vcvt.f32.s32 %v850
    %v852 = vcvt.f32.s32 %v846
    %v853 = vshll.u32 %v852, 16
    %v854 = vadd.s32 %v853, %v851
    %v855 = vand.u32 %v683, 65535
    %v856 = vshra.s32 %v683, 16
    %v857 = vcvt.s32.f32 %v855
    %v858 = vcvt.s32.f32 %v856
    %859 = vmin.xlane.f32.xlu0 %v858
    %v860 = vpop.xlane.xlu0 %859
    %vm861 = vcmp.eq.f32.partialorder %v858, %v860
    %v862 = vsel %vm861, %v857, inf
    %863 = vmin.xlane.f32.xlu0 %v862
    %v864 = vpop.xlane.xlu0 %863
    %v865 = vcvt.f32.s32 %v864
    %v866 = vcvt.f32.s32 %v860
    %v867 = vshll.u32 %v866, 16
    %v868 = vadd.s32 %v867, %v865
    %v869 = vand.u32 %v684, 65535
    %v870 = vshra.s32 %v684, 16
    %v871 = vcvt.s32.f32 %v869
    %v872 = vcvt.s32.f32 %v870
    %873 = vmin.xlane.f32.xlu0 %v872
    %v874 = vpop.xlane.xlu0 %873
    %vm875 = vcmp.eq.f32.partialorder %v872, %v874
    %v876 = vsel %vm875, %v871, inf
    %877 = vmin.xlane.f32.xlu0 %v876
    %v878 = vpop.xlane.xlu0 %877
    %v879 = vcvt.f32.s32 %v878
    %v880 = vcvt.f32.s32 %v874
    %v881 = vshll.u32 %v880, 16
    %v882 = vadd.s32 %v881, %v879
    %v883 = vand.u32 %v685, 65535
    %v884 = vshra.s32 %v685, 16
    %v885 = vcvt.s32.f32 %v883
    %v886 = vcvt.s32.f32 %v884
    %887 = vmin.xlane.f32.xlu0 %v886
    %v888 = vpop.xlane.xlu0 %887
    %vm889 = vcmp.eq.f32.partialorder %v886, %v888
    %v890 = vsel %vm889, %v885, inf
    %891 = vmin.xlane.f32.xlu0 %v890
    %v892 = vpop.xlane.xlu0 %891
    %v893 = vcvt.f32.s32 %v892
    %v894 = vcvt.f32.s32 %v888
    %v895 = vshll.u32 %v894, 16
    %v896 = vadd.s32 %v895, %v893
    %v897 = vand.u32 %v686, 65535
    %v898 = vshra.s32 %v686, 16
    %v899 = vcvt.s32.f32 %v897
    %v900 = vcvt.s32.f32 %v898
    %901 = vmin.xlane.f32.xlu0 %v900
    %v902 = vpop.xlane.xlu0 %901
    %vm903 = vcmp.eq.f32.partialorder %v900, %v902
    %v904 = vsel %vm903, %v899, inf
    %905 = vmin.xlane.f32.xlu0 %v904
    %v906 = vpop.xlane.xlu0 %905
    %v907 = vcvt.f32.s32 %v906
    %v908 = vcvt.f32.s32 %v902
    %v909 = vshll.u32 %v908, 16
    %v910 = vadd.s32 %v909, %v907
    %vm911 = vcmp.eq.s32.totalorder %v236, %v700
    %vm912 = vcmp.eq.s32.totalorder %v236, %v714
    %vm913 = vcmp.eq.s32.totalorder %v236, %v728
    %vm914 = vcmp.eq.s32.totalorder %v236, %v742
    %vm915 = vcmp.eq.s32.totalorder %v236, %v756
    %vm916 = vcmp.eq.s32.totalorder %v236, %v770
    %vm917 = vcmp.eq.s32.totalorder %v236, %v784
    %vm918 = vcmp.eq.s32.totalorder %v236, %v798
    %vm919 = vcmp.eq.s32.totalorder %v236, %v812
    %vm920 = vcmp.eq.s32.totalorder %v236, %v826
    %vm921 = vcmp.eq.s32.totalorder %v236, %v840
    %vm922 = vcmp.eq.s32.totalorder %v236, %v854
    %vm923 = vcmp.eq.s32.totalorder %v236, %v868
    %vm924 = vcmp.eq.s32.totalorder %v236, %v882
    %vm925 = vcmp.eq.s32.totalorder %v236, %v896
    %vm926 = vcmp.eq.s32.totalorder %v236, %v910
    %v927 = vsel %vm911, -inf, %v607
    %v928 = vsel %vm912, -inf, %v608
    %v929 = vsel %vm913, -inf, %v609
    %v930 = vsel %vm914, -inf, %v610
    %v931 = vsel %vm915, -inf, %v611
    %v932 = vsel %vm916, -inf, %v612
    %v933 = vsel %vm917, -inf, %v613
    %v934 = vsel %vm918, -inf, %v614
    %v935 = vsel %vm919, -inf, %v615
    %v936 = vsel %vm920, -inf, %v616
    %v937 = vsel %vm921, -inf, %v617
    %v938 = vsel %vm922, -inf, %v618
    %v939 = vsel %vm923, -inf, %v619
    %v940 = vsel %vm924, -inf, %v620
    %v941 = vsel %vm925, -inf, %v621
    %v942 = vsel %vm926, -inf, %v622
    %943 = vmax.xlane.f32.xlu0 %v927
    %v944 = vpop.xlane.xlu0 %943
    %945 = vmax.xlane.f32.xlu0 %v928
    %v946 = vpop.xlane.xlu0 %945
    %947 = vmax.xlane.f32.xlu0 %v929
    %v948 = vpop.xlane.xlu0 %947
    %949 = vmax.xlane.f32.xlu0 %v930
    %v950 = vpop.xlane.xlu0 %949
    %951 = vmax.xlane.f32.xlu0 %v931
    %v952 = vpop.xlane.xlu0 %951
    %953 = vmax.xlane.f32.xlu0 %v932
    %v954 = vpop.xlane.xlu0 %953
    %955 = vmax.xlane.f32.xlu0 %v933
    %v956 = vpop.xlane.xlu0 %955
    %957 = vmax.xlane.f32.xlu0 %v934
    %v958 = vpop.xlane.xlu0 %957
    %959 = vmax.xlane.f32.xlu0 %v935
    %v960 = vpop.xlane.xlu0 %959
    %961 = vmax.xlane.f32.xlu0 %v936
    %v962 = vpop.xlane.xlu0 %961
    %963 = vmax.xlane.f32.xlu0 %v937
    %v964 = vpop.xlane.xlu0 %963
    %965 = vmax.xlane.f32.xlu0 %v938
    %v966 = vpop.xlane.xlu0 %965
    %967 = vmax.xlane.f32.xlu0 %v939
    %v968 = vpop.xlane.xlu0 %967
    %969 = vmax.xlane.f32.xlu0 %v940
    %v970 = vpop.xlane.xlu0 %969
    %971 = vmax.xlane.f32.xlu0 %v941
    %v972 = vpop.xlane.xlu0 %971
    %973 = vmax.xlane.f32.xlu0 %v942
    %v974 = vpop.xlane.xlu0 %973
    %vm975 = vcmp.eq.f32.partialorder %v927, %v944
    %vm976 = vcmp.eq.f32.partialorder %v928, %v946
    %vm977 = vcmp.eq.f32.partialorder %v929, %v948
    %vm978 = vcmp.eq.f32.partialorder %v930, %v950
    %vm979 = vcmp.eq.f32.partialorder %v931, %v952
    %vm980 = vcmp.eq.f32.partialorder %v932, %v954
    %vm981 = vcmp.eq.f32.partialorder %v933, %v956
    %vm982 = vcmp.eq.f32.partialorder %v934, %v958
    %vm983 = vcmp.eq.f32.partialorder %v935, %v960
    %vm984 = vcmp.eq.f32.partialorder %v936, %v962
    %vm985 = vcmp.eq.f32.partialorder %v937, %v964
    %vm986 = vcmp.eq.f32.partialorder %v938, %v966
    %vm987 = vcmp.eq.f32.partialorder %v939, %v968
    %vm988 = vcmp.eq.f32.partialorder %v940, %v970
    %vm989 = vcmp.eq.f32.partialorder %v941, %v972
    %vm990 = vcmp.eq.f32.partialorder %v942, %v974
    %v991 = vsel %vm975, %v236, 128
    %v992 = vsel %vm976, %v236, 128
    %v993 = vsel %vm977, %v236, 128
    %v994 = vsel %vm978, %v236, 128
    %v995 = vsel %vm979, %v236, 128
    %v996 = vsel %vm980, %v236, 128
    %v997 = vsel %vm981, %v236, 128
    %v998 = vsel %vm982, %v236, 128
    %v999 = vsel %vm983, %v236, 128
    %v1000 = vsel %vm984, %v236, 128
    %v1001 = vsel %vm985, %v236, 128
    %v1002 = vsel %vm986, %v236, 128
    %v1003 = vsel %vm987, %v236, 128
    %v1004 = vsel %vm988, %v236, 128
    %v1005 = vsel %vm989, %v236, 128
    %v1006 = vsel %vm990, %v236, 128
    %v1007 = vand.u32 %v991, 65535
    %v1008 = vshra.s32 %v991, 16
    %v1009 = vcvt.s32.f32 %v1007
    %v1010 = vcvt.s32.f32 %v1008
    %1011 = vmin.xlane.f32.xlu0 %v1010
    %v1012 = vpop.xlane.xlu0 %1011
    %vm1013 = vcmp.eq.f32.partialorder %v1010, %v1012
    %v1014 = vsel %vm1013, %v1009, inf
    %1015 = vmin.xlane.f32.xlu0 %v1014
    %v1016 = vpop.xlane.xlu0 %1015
    %v1017 = vcvt.f32.s32 %v1016
    %v1018 = vcvt.f32.s32 %v1012
    %v1019 = vshll.u32 %v1018, 16
    %v1020 = vadd.s32 %v1019, %v1017
    %v1021 = vand.u32 %v992, 65535
    %v1022 = vshra.s32 %v992, 16
    %v1023 = vcvt.s32.f32 %v1021
    %v1024 = vcvt.s32.f32 %v1022
    %1025 = vmin.xlane.f32.xlu0 %v1024
    %v1026 = vpop.xlane.xlu0 %1025
    %vm1027 = vcmp.eq.f32.partialorder %v1024, %v1026
    %v1028 = vsel %vm1027, %v1023, inf
    %1029 = vmin.xlane.f32.xlu0 %v1028
    %v1030 = vpop.xlane.xlu0 %1029
    %v1031 = vcvt.f32.s32 %v1030
    %v1032 = vcvt.f32.s32 %v1026
    %v1033 = vshll.u32 %v1032, 16
    %v1034 = vadd.s32 %v1033, %v1031
    %v1035 = vand.u32 %v993, 65535
    %v1036 = vshra.s32 %v993, 16
    %v1037 = vcvt.s32.f32 %v1035
    %v1038 = vcvt.s32.f32 %v1036
    %1039 = vmin.xlane.f32.xlu0 %v1038
    %v1040 = vpop.xlane.xlu0 %1039
    %vm1041 = vcmp.eq.f32.partialorder %v1038, %v1040
    %v1042 = vsel %vm1041, %v1037, inf
    %1043 = vmin.xlane.f32.xlu0 %v1042
    %v1044 = vpop.xlane.xlu0 %1043
    %v1045 = vcvt.f32.s32 %v1044
    %v1046 = vcvt.f32.s32 %v1040
    %v1047 = vshll.u32 %v1046, 16
    %v1048 = vadd.s32 %v1047, %v1045
    %v1049 = vand.u32 %v994, 65535
    %v1050 = vshra.s32 %v994, 16
    %v1051 = vcvt.s32.f32 %v1049
    %v1052 = vcvt.s32.f32 %v1050
    %1053 = vmin.xlane.f32.xlu0 %v1052
    %v1054 = vpop.xlane.xlu0 %1053
    %vm1055 = vcmp.eq.f32.partialorder %v1052, %v1054
    %v1056 = vsel %vm1055, %v1051, inf
    %1057 = vmin.xlane.f32.xlu0 %v1056
    %v1058 = vpop.xlane.xlu0 %1057
    %v1059 = vcvt.f32.s32 %v1058
    %v1060 = vcvt.f32.s32 %v1054
    %v1061 = vshll.u32 %v1060, 16
    %v1062 = vadd.s32 %v1061, %v1059
    %v1063 = vand.u32 %v995, 65535
    %v1064 = vshra.s32 %v995, 16
    %v1065 = vcvt.s32.f32 %v1063
    %v1066 = vcvt.s32.f32 %v1064
    %1067 = vmin.xlane.f32.xlu0 %v1066
    %v1068 = vpop.xlane.xlu0 %1067
    %vm1069 = vcmp.eq.f32.partialorder %v1066, %v1068
    %v1070 = vsel %vm1069, %v1065, inf
    %1071 = vmin.xlane.f32.xlu0 %v1070
    %v1072 = vpop.xlane.xlu0 %1071
    %v1073 = vcvt.f32.s32 %v1072
    %v1074 = vcvt.f32.s32 %v1068
    %v1075 = vshll.u32 %v1074, 16
    %v1076 = vadd.s32 %v1075, %v1073
    %v1077 = vand.u32 %v996, 65535
    %v1078 = vshra.s32 %v996, 16
    %v1079 = vcvt.s32.f32 %v1077
    %v1080 = vcvt.s32.f32 %v1078
    %1081 = vmin.xlane.f32.xlu0 %v1080
    %v1082 = vpop.xlane.xlu0 %1081
    %vm1083 = vcmp.eq.f32.partialorder %v1080, %v1082
    %v1084 = vsel %vm1083, %v1079, inf
    %1085 = vmin.xlane.f32.xlu0 %v1084
    %v1086 = vpop.xlane.xlu0 %1085
    %v1087 = vcvt.f32.s32 %v1086
    %v1088 = vcvt.f32.s32 %v1082
    %v1089 = vshll.u32 %v1088, 16
    %v1090 = vadd.s32 %v1089, %v1087
    %v1091 = vand.u32 %v997, 65535
    %v1092 = vshra.s32 %v997, 16
    %v1093 = vcvt.s32.f32 %v1091
    %v1094 = vcvt.s32.f32 %v1092
    %1095 = vmin.xlane.f32.xlu0 %v1094
    %v1096 = vpop.xlane.xlu0 %1095
    %vm1097 = vcmp.eq.f32.partialorder %v1094, %v1096
    %v1098 = vsel %vm1097, %v1093, inf
    %1099 = vmin.xlane.f32.xlu0 %v1098
    %v1100 = vpop.xlane.xlu0 %1099
    %v1101 = vcvt.f32.s32 %v1100
    %v1102 = vcvt.f32.s32 %v1096
    %v1103 = vshll.u32 %v1102, 16
    %v1104 = vadd.s32 %v1103, %v1101
    %v1105 = vand.u32 %v998, 65535
    %v1106 = vshra.s32 %v998, 16
    %v1107 = vcvt.s32.f32 %v1105
    %v1108 = vcvt.s32.f32 %v1106
    %1109 = vmin.xlane.f32.xlu0 %v1108
    %v1110 = vpop.xlane.xlu0 %1109
    %vm1111 = vcmp.eq.f32.partialorder %v1108, %v1110
    %v1112 = vsel %vm1111, %v1107, inf
    %1113 = vmin.xlane.f32.xlu0 %v1112
    %v1114 = vpop.xlane.xlu0 %1113
    %v1115 = vcvt.f32.s32 %v1114
    %v1116 = vcvt.f32.s32 %v1110
    %v1117 = vshll.u32 %v1116, 16
    %v1118 = vadd.s32 %v1117, %v1115
    %v1119 = vand.u32 %v999, 65535
    %v1120 = vshra.s32 %v999, 16
    %v1121 = vcvt.s32.f32 %v1119
    %v1122 = vcvt.s32.f32 %v1120
    %1123 = vmin.xlane.f32.xlu0 %v1122
    %v1124 = vpop.xlane.xlu0 %1123
    %vm1125 = vcmp.eq.f32.partialorder %v1122, %v1124
    %v1126 = vsel %vm1125, %v1121, inf
    %1127 = vmin.xlane.f32.xlu0 %v1126
    %v1128 = vpop.xlane.xlu0 %1127
    %v1129 = vcvt.f32.s32 %v1128
    %v1130 = vcvt.f32.s32 %v1124
    %v1131 = vshll.u32 %v1130, 16
    %v1132 = vadd.s32 %v1131, %v1129
    %v1133 = vand.u32 %v1000, 65535
    %v1134 = vshra.s32 %v1000, 16
    %v1135 = vcvt.s32.f32 %v1133
    %v1136 = vcvt.s32.f32 %v1134
    %1137 = vmin.xlane.f32.xlu0 %v1136
    %v1138 = vpop.xlane.xlu0 %1137
    %vm1139 = vcmp.eq.f32.partialorder %v1136, %v1138
    %v1140 = vsel %vm1139, %v1135, inf
    %1141 = vmin.xlane.f32.xlu0 %v1140
    %v1142 = vpop.xlane.xlu0 %1141
    %v1143 = vcvt.f32.s32 %v1142
    %v1144 = vcvt.f32.s32 %v1138
    %v1145 = vshll.u32 %v1144, 16
    %v1146 = vadd.s32 %v1145, %v1143
    %v1147 = vand.u32 %v1001, 65535
    %v1148 = vshra.s32 %v1001, 16
    %v1149 = vcvt.s32.f32 %v1147
    %v1150 = vcvt.s32.f32 %v1148
    %1151 = vmin.xlane.f32.xlu0 %v1150
    %v1152 = vpop.xlane.xlu0 %1151
    %vm1153 = vcmp.eq.f32.partialorder %v1150, %v1152
    %v1154 = vsel %vm1153, %v1149, inf
    %1155 = vmin.xlane.f32.xlu0 %v1154
    %v1156 = vpop.xlane.xlu0 %1155
    %v1157 = vcvt.f32.s32 %v1156
    %v1158 = vcvt.f32.s32 %v1152
    %v1159 = vshll.u32 %v1158, 16
    %v1160 = vadd.s32 %v1159, %v1157
    %v1161 = vand.u32 %v1002, 65535
    %v1162 = vshra.s32 %v1002, 16
    %v1163 = vcvt.s32.f32 %v1161
    %v1164 = vcvt.s32.f32 %v1162
    %1165 = vmin.xlane.f32.xlu0 %v1164
    %v1166 = vpop.xlane.xlu0 %1165
    %vm1167 = vcmp.eq.f32.partialorder %v1164, %v1166
    %v1168 = vsel %vm1167, %v1163, inf
    %1169 = vmin.xlane.f32.xlu0 %v1168
    %v1170 = vpop.xlane.xlu0 %1169
    %v1171 = vcvt.f32.s32 %v1170
    %v1172 = vcvt.f32.s32 %v1166
    %v1173 = vshll.u32 %v1172, 16
    %v1174 = vadd.s32 %v1173, %v1171
    %v1175 = vand.u32 %v1003, 65535
    %v1176 = vshra.s32 %v1003, 16
    %v1177 = vcvt.s32.f32 %v1175
    %v1178 = vcvt.s32.f32 %v1176
    %1179 = vmin.xlane.f32.xlu0 %v1178
    %v1180 = vpop.xlane.xlu0 %1179
    %vm1181 = vcmp.eq.f32.partialorder %v1178, %v1180
    %v1182 = vsel %vm1181, %v1177, inf
    %1183 = vmin.xlane.f32.xlu0 %v1182
    %v1184 = vpop.xlane.xlu0 %1183
    %v1185 = vcvt.f32.s32 %v1184
    %v1186 = vcvt.f32.s32 %v1180
    %v1187 = vshll.u32 %v1186, 16
    %v1188 = vadd.s32 %v1187, %v1185
    %v1189 = vand.u32 %v1004, 65535
    %v1190 = vshra.s32 %v1004, 16
    %v1191 = vcvt.s32.f32 %v1189
    %v1192 = vcvt.s32.f32 %v1190
    %1193 = vmin.xlane.f32.xlu0 %v1192
    %v1194 = vpop.xlane.xlu0 %1193
    %vm1195 = vcmp.eq.f32.partialorder %v1192, %v1194
    %v1196 = vsel %vm1195, %v1191, inf
    %1197 = vmin.xlane.f32.xlu0 %v1196
    %v1198 = vpop.xlane.xlu0 %1197
    %v1199 = vcvt.f32.s32 %v1198
    %v1200 = vcvt.f32.s32 %v1194
    %v1201 = vshll.u32 %v1200, 16
    %v1202 = vadd.s32 %v1201, %v1199
    %v1203 = vand.u32 %v1005, 65535
    %v1204 = vshra.s32 %v1005, 16
    %v1205 = vcvt.s32.f32 %v1203
    %v1206 = vcvt.s32.f32 %v1204
    %1207 = vmin.xlane.f32.xlu0 %v1206
    %v1208 = vpop.xlane.xlu0 %1207
    %vm1209 = vcmp.eq.f32.partialorder %v1206, %v1208
    %v1210 = vsel %vm1209, %v1205, inf
    %1211 = vmin.xlane.f32.xlu0 %v1210
    %v1212 = vpop.xlane.xlu0 %1211
    %v1213 = vcvt.f32.s32 %v1212
    %v1214 = vcvt.f32.s32 %v1208
    %v1215 = vshll.u32 %v1214, 16
    %v1216 = vadd.s32 %v1215, %v1213
    %v1217 = vand.u32 %v1006, 65535
    %v1218 = vshra.s32 %v1006, 16
    %v1219 = vcvt.s32.f32 %v1217
    %v1220 = vcvt.s32.f32 %v1218
    %1221 = vmin.xlane.f32.xlu0 %v1220
    %v1222 = vpop.xlane.xlu0 %1221
    %vm1223 = vcmp.eq.f32.partialorder %v1220, %v1222
    %v1224 = vsel %vm1223, %v1219, inf
    %1225 = vmin.xlane.f32.xlu0 %v1224
    %v1226 = vpop.xlane.xlu0 %1225
    %v1227 = vcvt.f32.s32 %v1226
    %v1228 = vcvt.f32.s32 %v1222
    %v1229 = vshll.u32 %v1228, 16
    %v1230 = vadd.s32 %v1229, %v1227
    %vm1231 = vcmp.eq.s32.totalorder %v236, %v1020
    %vm1232 = vcmp.eq.s32.totalorder %v236, %v1034
    %vm1233 = vcmp.eq.s32.totalorder %v236, %v1048
    %vm1234 = vcmp.eq.s32.totalorder %v236, %v1062
    %vm1235 = vcmp.eq.s32.totalorder %v236, %v1076
    %vm1236 = vcmp.eq.s32.totalorder %v236, %v1090
    %vm1237 = vcmp.eq.s32.totalorder %v236, %v1104
    %vm1238 = vcmp.eq.s32.totalorder %v236, %v1118
    %vm1239 = vcmp.eq.s32.totalorder %v236, %v1132
    %vm1240 = vcmp.eq.s32.totalorder %v236, %v1146
    %vm1241 = vcmp.eq.s32.totalorder %v236, %v1160
    %vm1242 = vcmp.eq.s32.totalorder %v236, %v1174
    %vm1243 = vcmp.eq.s32.totalorder %v236, %v1188
    %vm1244 = vcmp.eq.s32.totalorder %v236, %v1202
    %vm1245 = vcmp.eq.s32.totalorder %v236, %v1216
    %vm1246 = vcmp.eq.s32.totalorder %v236, %v1230
    %v1247 = vsel %vm1231, -inf, %v927
    %v1248 = vsel %vm1232, -inf, %v928
    %v1249 = vsel %vm1233, -inf, %v929
    %v1250 = vsel %vm1234, -inf, %v930
    %v1251 = vsel %vm1235, -inf, %v931
    %v1252 = vsel %vm1236, -inf, %v932
    %v1253 = vsel %vm1237, -inf, %v933
    %v1254 = vsel %vm1238, -inf, %v934
    %v1255 = vsel %vm1239, -inf, %v935
    %v1256 = vsel %vm1240, -inf, %v936
    %v1257 = vsel %vm1241, -inf, %v937
    %v1258 = vsel %vm1242, -inf, %v938
    %v1259 = vsel %vm1243, -inf, %v939
    %v1260 = vsel %vm1244, -inf, %v940
    %v1261 = vsel %vm1245, -inf, %v941
    %v1262 = vsel %vm1246, -inf, %v942
    %1263 = vmax.xlane.f32.xlu0 %v1247
    %v1264 = vpop.xlane.xlu0 %1263
    %1265 = vmax.xlane.f32.xlu0 %v1248
    %v1266 = vpop.xlane.xlu0 %1265
    %1267 = vmax.xlane.f32.xlu0 %v1249
    %v1268 = vpop.xlane.xlu0 %1267
    %1269 = vmax.xlane.f32.xlu0 %v1250
    %v1270 = vpop.xlane.xlu0 %1269
    %1271 = vmax.xlane.f32.xlu0 %v1251
    %v1272 = vpop.xlane.xlu0 %1271
    %1273 = vmax.xlane.f32.xlu0 %v1252
    %v1274 = vpop.xlane.xlu0 %1273
    %1275 = vmax.xlane.f32.xlu0 %v1253
    %v1276 = vpop.xlane.xlu0 %1275
    %1277 = vmax.xlane.f32.xlu0 %v1254
    %v1278 = vpop.xlane.xlu0 %1277
    %1279 = vmax.xlane.f32.xlu0 %v1255
    %v1280 = vpop.xlane.xlu0 %1279
    %1281 = vmax.xlane.f32.xlu0 %v1256
    %v1282 = vpop.xlane.xlu0 %1281
    %1283 = vmax.xlane.f32.xlu0 %v1257
    %v1284 = vpop.xlane.xlu0 %1283
    %1285 = vmax.xlane.f32.xlu0 %v1258
    %v1286 = vpop.xlane.xlu0 %1285
    %1287 = vmax.xlane.f32.xlu0 %v1259
    %v1288 = vpop.xlane.xlu0 %1287
    %1289 = vmax.xlane.f32.xlu0 %v1260
    %v1290 = vpop.xlane.xlu0 %1289
    %1291 = vmax.xlane.f32.xlu0 %v1261
    %v1292 = vpop.xlane.xlu0 %1291
    %1293 = vmax.xlane.f32.xlu0 %v1262
    %v1294 = vpop.xlane.xlu0 %1293
    %vm1295 = vcmp.eq.f32.partialorder %v1247, %v1264
    %vm1296 = vcmp.eq.f32.partialorder %v1248, %v1266
    %vm1297 = vcmp.eq.f32.partialorder %v1249, %v1268
    %vm1298 = vcmp.eq.f32.partialorder %v1250, %v1270
    %vm1299 = vcmp.eq.f32.partialorder %v1251, %v1272
    %vm1300 = vcmp.eq.f32.partialorder %v1252, %v1274
    %vm1301 = vcmp.eq.f32.partialorder %v1253, %v1276
    %vm1302 = vcmp.eq.f32.partialorder %v1254, %v1278
    %vm1303 = vcmp.eq.f32.partialorder %v1255, %v1280
    %vm1304 = vcmp.eq.f32.partialorder %v1256, %v1282
    %vm1305 = vcmp.eq.f32.partialorder %v1257, %v1284
    %vm1306 = vcmp.eq.f32.partialorder %v1258, %v1286
    %vm1307 = vcmp.eq.f32.partialorder %v1259, %v1288
    %vm1308 = vcmp.eq.f32.partialorder %v1260, %v1290
    %vm1309 = vcmp.eq.f32.partialorder %v1261, %v1292
    %vm1310 = vcmp.eq.f32.partialorder %v1262, %v1294
    %v1311 = vsel %vm1295, %v236, 128
    %v1312 = vsel %vm1296, %v236, 128
    %v1313 = vsel %vm1297, %v236, 128
    %v1314 = vsel %vm1298, %v236, 128
    %v1315 = vsel %vm1299, %v236, 128
    %v1316 = vsel %vm1300, %v236, 128
    %v1317 = vsel %vm1301, %v236, 128
    %v1318 = vsel %vm1302, %v236, 128
    %v1319 = vsel %vm1303, %v236, 128
    %v1320 = vsel %vm1304, %v236, 128
    %v1321 = vsel %vm1305, %v236, 128
    %v1322 = vsel %vm1306, %v236, 128
    %v1323 = vsel %vm1307, %v236, 128
    %v1324 = vsel %vm1308, %v236, 128
    %v1325 = vsel %vm1309, %v236, 128
    %v1326 = vsel %vm1310, %v236, 128
    %v1327 = vand.u32 %v1311, 65535
    %v1328 = vshra.s32 %v1311, 16
    %v1329 = vcvt.s32.f32 %v1327
    %v1330 = vcvt.s32.f32 %v1328
    %1331 = vmin.xlane.f32.xlu0 %v1330
    %v1332 = vpop.xlane.xlu0 %1331
    %vm1333 = vcmp.eq.f32.partialorder %v1330, %v1332
    %v1334 = vsel %vm1333, %v1329, inf
    %1335 = vmin.xlane.f32.xlu0 %v1334
    %v1336 = vpop.xlane.xlu0 %1335
    %v1337 = vcvt.f32.s32 %v1336
    %v1338 = vcvt.f32.s32 %v1332
    %v1339 = vshll.u32 %v1338, 16
    %v1340 = vadd.s32 %v1339, %v1337
    %v1341 = vand.u32 %v1312, 65535
    %v1342 = vshra.s32 %v1312, 16
    %v1343 = vcvt.s32.f32 %v1341
    %v1344 = vcvt.s32.f32 %v1342
    %1345 = vmin.xlane.f32.xlu0 %v1344
    %v1346 = vpop.xlane.xlu0 %1345
    %vm1347 = vcmp.eq.f32.partialorder %v1344, %v1346
    %v1348 = vsel %vm1347, %v1343, inf
    %1349 = vmin.xlane.f32.xlu0 %v1348
    %v1350 = vpop.xlane.xlu0 %1349
    %v1351 = vcvt.f32.s32 %v1350
    %v1352 = vcvt.f32.s32 %v1346
    %v1353 = vshll.u32 %v1352, 16
    %v1354 = vadd.s32 %v1353, %v1351
    %v1355 = vand.u32 %v1313, 65535
    %v1356 = vshra.s32 %v1313, 16
    %v1357 = vcvt.s32.f32 %v1355
    %v1358 = vcvt.s32.f32 %v1356
    %1359 = vmin.xlane.f32.xlu0 %v1358
    %v1360 = vpop.xlane.xlu0 %1359
    %vm1361 = vcmp.eq.f32.partialorder %v1358, %v1360
    %v1362 = vsel %vm1361, %v1357, inf
    %1363 = vmin.xlane.f32.xlu0 %v1362
    %v1364 = vpop.xlane.xlu0 %1363
    %v1365 = vcvt.f32.s32 %v1364
    %v1366 = vcvt.f32.s32 %v1360
    %v1367 = vshll.u32 %v1366, 16
    %v1368 = vadd.s32 %v1367, %v1365
    %v1369 = vand.u32 %v1314, 65535
    %v1370 = vshra.s32 %v1314, 16
    %v1371 = vcvt.s32.f32 %v1369
    %v1372 = vcvt.s32.f32 %v1370
    %1373 = vmin.xlane.f32.xlu0 %v1372
    %v1374 = vpop.xlane.xlu0 %1373
    %vm1375 = vcmp.eq.f32.partialorder %v1372, %v1374
    %v1376 = vsel %vm1375, %v1371, inf
    %1377 = vmin.xlane.f32.xlu0 %v1376
    %v1378 = vpop.xlane.xlu0 %1377
    %v1379 = vcvt.f32.s32 %v1378
    %v1380 = vcvt.f32.s32 %v1374
    %v1381 = vshll.u32 %v1380, 16
    %v1382 = vadd.s32 %v1381, %v1379
    %v1383 = vand.u32 %v1315, 65535
    %v1384 = vshra.s32 %v1315, 16
    %v1385 = vcvt.s32.f32 %v1383
    %v1386 = vcvt.s32.f32 %v1384
    %1387 = vmin.xlane.f32.xlu0 %v1386
    %v1388 = vpop.xlane.xlu0 %1387
    %vm1389 = vcmp.eq.f32.partialorder %v1386, %v1388
    %v1390 = vsel %vm1389, %v1385, inf
    %1391 = vmin.xlane.f32.xlu0 %v1390
    %v1392 = vpop.xlane.xlu0 %1391
    %v1393 = vcvt.f32.s32 %v1392
    %v1394 = vcvt.f32.s32 %v1388
    %v1395 = vshll.u32 %v1394, 16
    %v1396 = vadd.s32 %v1395, %v1393
    %v1397 = vand.u32 %v1316, 65535
    %v1398 = vshra.s32 %v1316, 16
    %v1399 = vcvt.s32.f32 %v1397
    %v1400 = vcvt.s32.f32 %v1398
    %1401 = vmin.xlane.f32.xlu0 %v1400
    %v1402 = vpop.xlane.xlu0 %1401
    %vm1403 = vcmp.eq.f32.partialorder %v1400, %v1402
    %v1404 = vsel %vm1403, %v1399, inf
    %1405 = vmin.xlane.f32.xlu0 %v1404
    %v1406 = vpop.xlane.xlu0 %1405
    %v1407 = vcvt.f32.s32 %v1406
    %v1408 = vcvt.f32.s32 %v1402
    %v1409 = vshll.u32 %v1408, 16
    %v1410 = vadd.s32 %v1409, %v1407
    %v1411 = vand.u32 %v1317, 65535
    %v1412 = vshra.s32 %v1317, 16
    %v1413 = vcvt.s32.f32 %v1411
    %v1414 = vcvt.s32.f32 %v1412
    %1415 = vmin.xlane.f32.xlu0 %v1414
    %v1416 = vpop.xlane.xlu0 %1415
    %vm1417 = vcmp.eq.f32.partialorder %v1414, %v1416
    %v1418 = vsel %vm1417, %v1413, inf
    %1419 = vmin.xlane.f32.xlu0 %v1418
    %v1420 = vpop.xlane.xlu0 %1419
    %v1421 = vcvt.f32.s32 %v1420
    %v1422 = vcvt.f32.s32 %v1416
    %v1423 = vshll.u32 %v1422, 16
    %v1424 = vadd.s32 %v1423, %v1421
    %v1425 = vand.u32 %v1318, 65535
    %v1426 = vshra.s32 %v1318, 16
    %v1427 = vcvt.s32.f32 %v1425
    %v1428 = vcvt.s32.f32 %v1426
    %1429 = vmin.xlane.f32.xlu0 %v1428
    %v1430 = vpop.xlane.xlu0 %1429
    %vm1431 = vcmp.eq.f32.partialorder %v1428, %v1430
    %v1432 = vsel %vm1431, %v1427, inf
    %1433 = vmin.xlane.f32.xlu0 %v1432
    %v1434 = vpop.xlane.xlu0 %1433
    %v1435 = vcvt.f32.s32 %v1434
    %v1436 = vcvt.f32.s32 %v1430
    %v1437 = vshll.u32 %v1436, 16
    %v1438 = vadd.s32 %v1437, %v1435
    %v1439 = vand.u32 %v1319, 65535
    %v1440 = vshra.s32 %v1319, 16
    %v1441 = vcvt.s32.f32 %v1439
    %v1442 = vcvt.s32.f32 %v1440
    %1443 = vmin.xlane.f32.xlu0 %v1442
    %v1444 = vpop.xlane.xlu0 %1443
    %vm1445 = vcmp.eq.f32.partialorder %v1442, %v1444
    %v1446 = vsel %vm1445, %v1441, inf
    %1447 = vmin.xlane.f32.xlu0 %v1446
    %v1448 = vpop.xlane.xlu0 %1447
    %v1449 = vcvt.f32.s32 %v1448
    %v1450 = vcvt.f32.s32 %v1444
    %v1451 = vshll.u32 %v1450, 16
    %v1452 = vadd.s32 %v1451, %v1449
    %v1453 = vand.u32 %v1320, 65535
    %v1454 = vshra.s32 %v1320, 16
    %v1455 = vcvt.s32.f32 %v1453
    %v1456 = vcvt.s32.f32 %v1454
    %1457 = vmin.xlane.f32.xlu0 %v1456
    %v1458 = vpop.xlane.xlu0 %1457
    %vm1459 = vcmp.eq.f32.partialorder %v1456, %v1458
    %v1460 = vsel %vm1459, %v1455, inf
    %1461 = vmin.xlane.f32.xlu0 %v1460
    %v1462 = vpop.xlane.xlu0 %1461
    %v1463 = vcvt.f32.s32 %v1462
    %v1464 = vcvt.f32.s32 %v1458
    %v1465 = vshll.u32 %v1464, 16
    %v1466 = vadd.s32 %v1465, %v1463
    %v1467 = vand.u32 %v1321, 65535
    %v1468 = vshra.s32 %v1321, 16
    %v1469 = vcvt.s32.f32 %v1467
    %v1470 = vcvt.s32.f32 %v1468
    %1471 = vmin.xlane.f32.xlu0 %v1470
    %v1472 = vpop.xlane.xlu0 %1471
    %vm1473 = vcmp.eq.f32.partialorder %v1470, %v1472
    %v1474 = vsel %vm1473, %v1469, inf
    %1475 = vmin.xlane.f32.xlu0 %v1474
    %v1476 = vpop.xlane.xlu0 %1475
    %v1477 = vcvt.f32.s32 %v1476
    %v1478 = vcvt.f32.s32 %v1472
    %v1479 = vshll.u32 %v1478, 16
    %v1480 = vadd.s32 %v1479, %v1477
    %v1481 = vand.u32 %v1322, 65535
    %v1482 = vshra.s32 %v1322, 16
    %v1483 = vcvt.s32.f32 %v1481
    %v1484 = vcvt.s32.f32 %v1482
    %1485 = vmin.xlane.f32.xlu0 %v1484
    %v1486 = vpop.xlane.xlu0 %1485
    %vm1487 = vcmp.eq.f32.partialorder %v1484, %v1486
    %v1488 = vsel %vm1487, %v1483, inf
    %1489 = vmin.xlane.f32.xlu0 %v1488
    %v1490 = vpop.xlane.xlu0 %1489
    %v1491 = vcvt.f32.s32 %v1490
    %v1492 = vcvt.f32.s32 %v1486
    %v1493 = vshll.u32 %v1492, 16
    %v1494 = vadd.s32 %v1493, %v1491
    %v1495 = vand.u32 %v1323, 65535
    %v1496 = vshra.s32 %v1323, 16
    %v1497 = vcvt.s32.f32 %v1495
    %v1498 = vcvt.s32.f32 %v1496
    %1499 = vmin.xlane.f32.xlu0 %v1498
    %v1500 = vpop.xlane.xlu0 %1499
    %vm1501 = vcmp.eq.f32.partialorder %v1498, %v1500
    %v1502 = vsel %vm1501, %v1497, inf
    %1503 = vmin.xlane.f32.xlu0 %v1502
    %v1504 = vpop.xlane.xlu0 %1503
    %v1505 = vcvt.f32.s32 %v1504
    %v1506 = vcvt.f32.s32 %v1500
    %v1507 = vshll.u32 %v1506, 16
    %v1508 = vadd.s32 %v1507, %v1505
    %v1509 = vand.u32 %v1324, 65535
    %v1510 = vshra.s32 %v1324, 16
    %v1511 = vcvt.s32.f32 %v1509
    %v1512 = vcvt.s32.f32 %v1510
    %1513 = vmin.xlane.f32.xlu0 %v1512
    %v1514 = vpop.xlane.xlu0 %1513
    %vm1515 = vcmp.eq.f32.partialorder %v1512, %v1514
    %v1516 = vsel %vm1515, %v1511, inf
    %1517 = vmin.xlane.f32.xlu0 %v1516
    %v1518 = vpop.xlane.xlu0 %1517
    %v1519 = vcvt.f32.s32 %v1518
    %v1520 = vcvt.f32.s32 %v1514
    %v1521 = vshll.u32 %v1520, 16
    %v1522 = vadd.s32 %v1521, %v1519
    %v1523 = vand.u32 %v1325, 65535
    %v1524 = vshra.s32 %v1325, 16
    %v1525 = vcvt.s32.f32 %v1523
    %v1526 = vcvt.s32.f32 %v1524
    %1527 = vmin.xlane.f32.xlu0 %v1526
    %v1528 = vpop.xlane.xlu0 %1527
    %vm1529 = vcmp.eq.f32.partialorder %v1526, %v1528
    %v1530 = vsel %vm1529, %v1525, inf
    %1531 = vmin.xlane.f32.xlu0 %v1530
    %v1532 = vpop.xlane.xlu0 %1531
    %v1533 = vcvt.f32.s32 %v1532
    %v1534 = vcvt.f32.s32 %v1528
    %v1535 = vshll.u32 %v1534, 16
    %v1536 = vadd.s32 %v1535, %v1533
    %v1537 = vand.u32 %v1326, 65535
    %v1538 = vshra.s32 %v1326, 16
    %v1539 = vcvt.s32.f32 %v1537
    %v1540 = vcvt.s32.f32 %v1538
    %1541 = vmin.xlane.f32.xlu0 %v1540
    %v1542 = vpop.xlane.xlu0 %1541
    %vm1543 = vcmp.eq.f32.partialorder %v1540, %v1542
    %v1544 = vsel %vm1543, %v1539, inf
    %1545 = vmin.xlane.f32.xlu0 %v1544
    %v1546 = vpop.xlane.xlu0 %1545
    %v1547 = vcvt.f32.s32 %v1546
    %v1548 = vcvt.f32.s32 %v1542
    %v1549 = vshll.u32 %v1548, 16
    %v1550 = vadd.s32 %v1549, %v1547
    %vm1551 = vcmask 7168
    %v1552 = vsel %vm1551, %v304, %v624
    %v1553 = vsel %vm1551, %v306, %v626
    %v1554 = vsel %vm1551, %v308, %v628
    %v1555 = vsel %vm1551, %v310, %v630
    %v1556 = vsel %vm1551, %v312, %v632
    %v1557 = vsel %vm1551, %v314, %v634
    %v1558 = vsel %vm1551, %v316, %v636
    %v1559 = vsel %vm1551, %v318, %v638
    %v1560 = vsel %vm1551, %v320, %v640
    %v1561 = vsel %vm1551, %v322, %v642
    %v1562 = vsel %vm1551, %v324, %v644
    %v1563 = vsel %vm1551, %v326, %v646
    %v1564 = vsel %vm1551, %v328, %v648
    %v1565 = vsel %vm1551, %v330, %v650
    %v1566 = vsel %vm1551, %v332, %v652
    %v1567 = vsel %vm1551, %v334, %v654
    %vm1568 = vcmask 15360
    %v1569 = vsel %vm1568, %v1552, %v944
    %v1570 = vsel %vm1568, %v1553, %v946
    %v1571 = vsel %vm1568, %v1554, %v948
    %v1572 = vsel %vm1568, %v1555, %v950
    %v1573 = vsel %vm1568, %v1556, %v952
    %v1574 = vsel %vm1568, %v1557, %v954
    %v1575 = vsel %vm1568, %v1558, %v956
    %v1576 = vsel %vm1568, %v1559, %v958
    %v1577 = vsel %vm1568, %v1560, %v960
    %v1578 = vsel %vm1568, %v1561, %v962
    %v1579 = vsel %vm1568, %v1562, %v964
    %v1580 = vsel %vm1568, %v1563, %v966
    %v1581 = vsel %vm1568, %v1564, %v968
    %v1582 = vsel %vm1568, %v1565, %v970
    %v1583 = vsel %vm1568, %v1566, %v972
    %v1584 = vsel %vm1568, %v1567, %v974
    %vm1585 = vcmask 23552
    %v1586 = vsel %vm1585, %v1569, %v1264
    %v1587 = vsel %vm1585, %v1570, %v1266
    %v1588 = vsel %vm1585, %v1571, %v1268
    %v1589 = vsel %vm1585, %v1572, %v1270
    %v1590 = vsel %vm1585, %v1573, %v1272
    %v1591 = vsel %vm1585, %v1574, %v1274
    %v1592 = vsel %vm1585, %v1575, %v1276
    %v1593 = vsel %vm1585, %v1576, %v1278
    %v1594 = vsel %vm1585, %v1577, %v1280
    %v1595 = vsel %vm1585, %v1578, %v1282
    %v1596 = vsel %vm1585, %v1579, %v1284
    %v1597 = vsel %vm1585, %v1580, %v1286
    %v1598 = vsel %vm1585, %v1581, %v1288
    %v1599 = vsel %vm1585, %v1582, %v1290
    %v1600 = vsel %vm1585, %v1583, %v1292
    %v1601 = vsel %vm1585, %v1584, %v1294
    %v1602 = vsel %vm1551, %v380, %v700
    %v1603 = vsel %vm1551, %v394, %v714
    %v1604 = vsel %vm1551, %v408, %v728
    %v1605 = vsel %vm1551, %v422, %v742
    %v1606 = vsel %vm1551, %v436, %v756
    %v1607 = vsel %vm1551, %v450, %v770
    %v1608 = vsel %vm1551, %v464, %v784
    %v1609 = vsel %vm1551, %v478, %v798
    %v1610 = vsel %vm1551, %v492, %v812
    %v1611 = vsel %vm1551, %v506, %v826
    %v1612 = vsel %vm1551, %v520, %v840
    %v1613 = vsel %vm1551, %v534, %v854
    %v1614 = vsel %vm1551, %v548, %v868
    %v1615 = vsel %vm1551, %v562, %v882
    %v1616 = vsel %vm1551, %v576, %v896
    %v1617 = vsel %vm1551, %v590, %v910
    %v1618 = vsel %vm1568, %v1602, %v1020
    %v1619 = vsel %vm1568, %v1603, %v1034
    %v1620 = vsel %vm1568, %v1604, %v1048
    %v1621 = vsel %vm1568, %v1605, %v1062
    %v1622 = vsel %vm1568, %v1606, %v1076
    %v1623 = vsel %vm1568, %v1607, %v1090
    %v1624 = vsel %vm1568, %v1608, %v1104
    %v1625 = vsel %vm1568, %v1609, %v1118
    %v1626 = vsel %vm1568, %v1610, %v1132
    %v1627 = vsel %vm1568, %v1611, %v1146
    %v1628 = vsel %vm1568, %v1612, %v1160
    %v1629 = vsel %vm1568, %v1613, %v1174
    %v1630 = vsel %vm1568, %v1614, %v1188
    %v1631 = vsel %vm1568, %v1615, %v1202
    %v1632 = vsel %vm1568, %v1616, %v1216
    %v1633 = vsel %vm1568, %v1617, %v1230
    %v1634 = vsel %vm1585, %v1618, %v1340
    %v1635 = vsel %vm1585, %v1619, %v1354
    %v1636 = vsel %vm1585, %v1620, %v1368
    %v1637 = vsel %vm1585, %v1621, %v1382
    %v1638 = vsel %vm1585, %v1622, %v1396
    %v1639 = vsel %vm1585, %v1623, %v1410
    %v1640 = vsel %vm1585, %v1624, %v1424
    %v1641 = vsel %vm1585, %v1625, %v1438
    %v1642 = vsel %vm1585, %v1626, %v1452
    %v1643 = vsel %vm1585, %v1627, %v1466
    %v1644 = vsel %vm1585, %v1628, %v1480
    %v1645 = vsel %vm1585, %v1629, %v1494
    %v1646 = vsel %vm1585, %v1630, %v1508
    %v1647 = vsel %vm1585, %v1631, %v1522
    %v1648 = vsel %vm1585, %v1632, %v1536
    %v1649 = vsel %vm1585, %v1633, %v1550
    %1650 = vrot.lane.b32.xlu0 %v1634, 4
    %v1651 = vpop.permute.xlu0 %1650
    %1652 = vrot.lane.b32.xlu0 %v1635, 4
    %v1653 = vpop.permute.xlu0 %1652
    %1654 = vrot.lane.b32.xlu0 %v1636, 4
    %v1655 = vpop.permute.xlu0 %1654
    %1656 = vrot.lane.b32.xlu0 %v1637, 4
    %v1657 = vpop.permute.xlu0 %1656
    %1658 = vrot.lane.b32.xlu0 %v1638, 4
    %v1659 = vpop.permute.xlu0 %1658
    %1660 = vrot.lane.b32.xlu0 %v1639, 4
    %v1661 = vpop.permute.xlu0 %1660
    %1662 = vrot.lane.b32.xlu0 %v1640, 4
    %v1663 = vpop.permute.xlu0 %1662
    %1664 = vrot.lane.b32.xlu0 %v1641, 4
    %v1665 = vpop.permute.xlu0 %1664
    %1666 = vrot.lane.b32.xlu0 %v1642, 4
    %v1667 = vpop.permute.xlu0 %1666
    %1668 = vrot.lane.b32.xlu0 %v1643, 4
    %v1669 = vpop.permute.xlu0 %1668
    %1670 = vrot.lane.b32.xlu0 %v1644, 4
    %v1671 = vpop.permute.xlu0 %1670
    %1672 = vrot.lane.b32.xlu0 %v1645, 4
    %v1673 = vpop.permute.xlu0 %1672
    %1674 = vrot.lane.b32.xlu0 %v1646, 4
    %v1675 = vpop.permute.xlu0 %1674
    %1676 = vrot.lane.b32.xlu0 %v1647, 4
    %v1677 = vpop.permute.xlu0 %1676
    %1678 = vrot.lane.b32.xlu0 %v1648, 4
    %v1679 = vpop.permute.xlu0 %1678
    %1680 = vrot.lane.b32.xlu0 %v1649, 4
    %v1681 = vpop.permute.xlu0 %1680
    %vm1698 = vcmask 31744
    %v1699 = vsel %vm1698, %v1586, %v1651
    %v1700 = vsel %vm1698, %v1587, %v1653
    %v1701 = vsel %vm1698, %v1588, %v1655
    %v1702 = vsel %vm1698, %v1589, %v1657
    %v1703 = vsel %vm1698, %v1590, %v1659
    %v1704 = vsel %vm1698, %v1591, %v1661
    %v1705 = vsel %vm1698, %v1592, %v1663
    %v1706 = vsel %vm1698, %v1593, %v1665
    %v1707 = vsel %vm1698, %v1594, %v1667
    %v1708 = vsel %vm1698, %v1595, %v1669
    %v1709 = vsel %vm1698, %v1596, %v1671
    %v1710 = vsel %vm1698, %v1597, %v1673
    %v1711 = vsel %vm1698, %v1598, %v1675
    %v1712 = vsel %vm1698, %v1599, %v1677
    %v1713 = vsel %vm1698, %v1600, %v1679
    %v1714 = vsel %vm1698, %v1601, %v1681
    %vm1715 = vcmask 64512
    %v1716 = vsel %vm1715, %v1699, 0.0
    %v1717 = vsel %vm1715, %v1700, 0.0
    %v1718 = vsel %vm1715, %v1701, 0.0
    %v1719 = vsel %vm1715, %v1702, 0.0
    %v1720 = vsel %vm1715, %v1703, 0.0
    %v1721 = vsel %vm1715, %v1704, 0.0
    %v1722 = vsel %vm1715, %v1705, 0.0
    %v1723 = vsel %vm1715, %v1706, 0.0
    %v1724 = vsel %vm1715, %v1707, 0.0
    %v1725 = vsel %vm1715, %v1708, 0.0
    %v1726 = vsel %vm1715, %v1709, 0.0
    %v1727 = vsel %vm1715, %v1710, 0.0
    %v1728 = vsel %vm1715, %v1711, 0.0
    %v1729 = vsel %vm1715, %v1712, 0.0
    %v1730 = vsel %vm1715, %v1713, 0.0
    %v1731 = vsel %vm1715, %v1714, 0.0
    %1732 = vst [vmem:[#allocation5] sm:$0xff] %v1716
    %1733 = vst [vmem:[#allocation5 + $0x8] sm:$0xff] %v1717
    %1734 = vst [vmem:[#allocation5 + $0x10] sm:$0xff] %v1718
    %1735 = vst [vmem:[#allocation5 + $0x18] sm:$0xff] %v1719
    %1736 = vst [vmem:[#allocation5 + $0x20] sm:$0xff] %v1720
    %1737 = vst [vmem:[#allocation5 + $0x28] sm:$0xff] %v1721
    %1738 = vst [vmem:[#allocation5 + $0x30] sm:$0xff] %v1722
    %1739 = vst [vmem:[#allocation5 + $0x38] sm:$0xff] %v1723
    %1740 = vst [vmem:[#allocation5 + $0x40] sm:$0xff] %v1724
    %1741 = vst [vmem:[#allocation5 + $0x48] sm:$0xff] %v1725
    %1742 = vst [vmem:[#allocation5 + $0x50] sm:$0xff] %v1726
    %1743 = vst [vmem:[#allocation5 + $0x58] sm:$0xff] %v1727
    %1744 = vst [vmem:[#allocation5 + $0x60] sm:$0xff] %v1728
    %1745 = vst [vmem:[#allocation5 + $0x68] sm:$0xff] %v1729
    %1746 = vst [vmem:[#allocation5 + $0x70] sm:$0xff] %v1730
    %1747 = vst [vmem:[#allocation5 + $0x78] sm:$0xff] %v1731
    // Predicated region
    $region10: #{tpu_custom_call.1} parent=1 // pred_check
      _
    $region11: #{tpu_custom_call.1} parent=1 // pred_check_branch
      %1749 = sbr.rel (0) target = $region13
    $region12: #{tpu_custom_call.1} parent=1 // pred_region
      %s1751 = ssub.s32 2048, 2048
      %1752 = vsyncadd [#allocation4], %s1751
      %s1753 = sshll.u32 [#allocation5], 4
      %s1754 = int_to_ptr.vmem [resolvable:$true] %s1753
      %1759 = dma.vmem_to_hbm [thread:$0]  %s1754, 2048, %s1, [#allocation4], 128, 128, 8
    $region13: #{tpu_custom_call.1} parent=1 // pred_fallthru
      _
    // Predicated region
    $region14: #{tpu_custom_call.1} parent=1 // pred_check
      _
    $region15: #{tpu_custom_call.1} parent=1 // pred_check_branch
      %1761 = sbr.rel (0) target = $region17
    $region16: #{tpu_custom_call.1} parent=1 // pred_region
      %1762 = dma.done [#allocation4], 2048
    $region17: #{tpu_custom_call.1} parent=1 // pred_fallthru
      _
    %1763 = vsyncpa [#allocation3], 1
    %1764 = vsyncpa [#allocation4], 1

</llo_original>
